<compile_context>
chip_gen: v5e
topology: v5e:2x2
jax: 0.10.0
libtpu: 0.0.40
codegen_flags: <defaults>
</compile_context>

<pallas_src>
import jax
import jax.numpy as jnp
from jax.experimental import pallas as pl
from jax.experimental.pallas import tpu as pltpu

IN_FEATURES = 12 * 12 * 3 * 2   # 864
HIDDEN = 512
NEG_SLOPE = 0.01                # PyTorch nn.LeakyReLU default
MAX_TB = 512                    # large-batch tile (fits v5e default scoped VMEM)


def _inverse_model_kernel(x_ref, w1_ref, b1_ref, w2_ref, b2_ref, o_ref):
    # x_ref: (TB, 864) f32, w1_ref: (864, 512) bf16, w2_ref: (512, A_pad) bf16
    # b1_ref: (1, 512) f32, b2_ref: (1, A_pad) f32, o_ref: (TB, A_pad)
    x_bf = x_ref[...].astype(jnp.bfloat16)               # in-kernel cast (VPU)
    h = jnp.dot(x_bf, w1_ref[...], preferred_element_type=jnp.float32)
    h = h + b1_ref[...]                                   # f32 VPU
    h = jnp.maximum(h, NEG_SLOPE * h)                     # LeakyReLU (mul+max)
    y = jnp.dot(h.astype(jnp.bfloat16), w2_ref[...],
                preferred_element_type=jnp.float32)
    o_ref[...] = (y + b2_ref[...]).astype(o_ref.dtype)


def prepare_params(w1, b1, w2, b2):
    """One-time parameter prep: bf16 MXU weights, lane-dense (128) action pad.

    Call once and reuse the result across forward calls so the cast/pad HBM
    passes are not paid per step.
    """
    action_size = w2.shape[1]
    a_pad = 128 * pl.cdiv(action_size, 128)
    w1_bf = w1.astype(jnp.bfloat16)
    w2_bf = jnp.pad(w2, ((0, 0), (0, a_pad - action_size))).astype(jnp.bfloat16)
    b1_2d = b1.reshape(1, HIDDEN).astype(jnp.float32)
    b2_2d = jnp.pad(b2, (0, a_pad - action_size)).reshape(1, a_pad).astype(jnp.float32)
    return (w1_bf, b1_2d, w2_bf, b2_2d, action_size, a_pad)


def inverse_model_forward(x, prepared, out_dtype=jnp.float32):
    """x: (B, 864) f32 (native, no host cast); prepared = prepare_params(...)."""
    w1_bf, b1_2d, w2_bf, b2_2d, action_size, a_pad = prepared
    B = x.shape[0]

    if B <= MAX_TB:
        # Single grid step; full-dim block needs no batch padding at all.
        tb = B
        grid = (1,)
    else:
        # March 512-row tiles over the batch; Pallas masks the boundary block,
        # so no host-side padding of x is needed.
        tb = MAX_TB
        grid = (pl.cdiv(B, tb),)

    out = pl.pallas_call(
        _inverse_model_kernel,
        out_shape=jax.ShapeDtypeStruct((B, a_pad), out_dtype),
        grid=grid,
        in_specs=[
            # x tiles march over the batch; weights/biases stay VMEM-resident
            # (constant block index across the batch axis).
            pl.BlockSpec((tb, IN_FEATURES), lambda i: (i, 0)),
            pl.BlockSpec((IN_FEATURES, HIDDEN), lambda i: (0, 0)),
            pl.BlockSpec((1, HIDDEN), lambda i: (0, 0)),
            pl.BlockSpec((HIDDEN, a_pad), lambda i: (0, 0)),
            pl.BlockSpec((1, a_pad), lambda i: (0, 0)),
        ],
        out_specs=pl.BlockSpec((tb, a_pad), lambda i: (i, 0)),
        compiler_params=pltpu.CompilerParams(
            dimension_semantics=("parallel",)),
    )(x, w1_bf, b1_2d, w2_bf, b2_2d)

    return out[:, :action_size]


def inverse_model_forward_raw(x, w1, b1, w2, b2):
    """Convenience path matching the original signature (prep per call)."""
    return inverse_model_forward(x, prepare_params(w1, b1, w2, b2))


def init_params(key, action_size):
    """Synthetic init matching PyTorch parameter shapes
    (Linear weights (out, in) -> stored transposed as (in, out) here)."""
    k1, k2, k3, k4 = jax.random.split(key, 4)
    bound1 = 1.0 / jnp.sqrt(IN_FEATURES)
    bound2 = 1.0 / jnp.sqrt(HIDDEN)
    w1 = jax.random.uniform(k1, (IN_FEATURES, HIDDEN), jnp.float32, -bound1, bound1)
    b1 = jax.random.uniform(k2, (HIDDEN,), jnp.float32, -bound1, bound1)
    w2 = jax.random.uniform(k3, (HIDDEN, action_size), jnp.float32, -bound2, bound2)
    b2 = jax.random.uniform(k4, (action_size,), jnp.float32, -bound2, bound2)
    return w1, b1, w2, b2


def reference_forward_f32(x, w1, b1, w2, b2):
    h = x @ w1 + b1
    h = jnp.where(h > 0, h, NEG_SLOPE * h)
    return h @ w2 + b2


def reference_forward_bf16(x, w1, b1, w2, b2):
    # Emulates the kernel's precision choices (bf16 MXU inputs, f32 accum).
    h = jnp.dot(x.astype(jnp.bfloat16), w1.astype(jnp.bfloat16),
                preferred_element_type=jnp.float32) + b1
    h = jnp.where(h > 0, h, NEG_SLOPE * h)
    return jnp.dot(h.astype(jnp.bfloat16), w2.astype(jnp.bfloat16),
                   preferred_element_type=jnp.float32) + b2


if __name__ == "__main__":
    key = jax.random.PRNGKey(0)
    kx, kp = jax.random.split(key)

    batch = 2
    action_size = 4

    x = jax.random.normal(kx, (batch, IN_FEATURES), jnp.float32)
    w1, b1, w2, b2 = init_params(kp, action_size)

    # Prepare weights once (hoisted per-call cast/pad), then run the kernel.
    prepared = prepare_params(w1, b1, w2, b2)
    out = inverse_model_forward(x, prepared)
    out = jax.block_until_ready(out)
    assert out.shape == (batch, action_size)

    ref_bf16 = reference_forward_bf16(x, w1, b1, w2, b2)
    ref_f32 = reference_forward_f32(x, w1, b1, w2, b2)
    assert jnp.allclose(out, ref_bf16, atol=2e-3, rtol=2e-3)
    assert jnp.allclose(out, ref_f32, atol=3e-2, rtol=3e-2)

    print("KERNEL_OK")
</pallas_src>

<mosaic_0001>
module attributes {stable_mosaic.version = 11 : i64} {
  func.func @_inverse_model_kernel(%arg0: i32, %arg1: memref<2x864xf32, #tpu.memory_space<vmem>>, %arg2: memref<864x512xbf16, #tpu.memory_space<vmem>>, %arg3: memref<1x512xf32, #tpu.memory_space<vmem>>, %arg4: memref<512x128xbf16, #tpu.memory_space<vmem>>, %arg5: memref<1x128xf32, #tpu.memory_space<vmem>>, %arg6: memref<2x128xf32, #tpu.memory_space<vmem>>) attributes {dimension_semantics = [#tpu.dimension_semantics<parallel>], iteration_bounds = array<i64: 1>, scalar_prefetch = 0 : i64, scratch_operands = 0 : i64, tpu.core_type = #tpu.core_type<tc>, window_params = [{transform_indices = @transform_0, window_bounds = array<i64: 2, 864>}, {pipeline_mode = #tpu.pipeline_mode<synchronous>, transform_indices = @transform_1, window_bounds = array<i64: 864, 512>}, {pipeline_mode = #tpu.pipeline_mode<synchronous>, transform_indices = @transform_2, window_bounds = array<i64: 1, 512>}, {pipeline_mode = #tpu.pipeline_mode<synchronous>, transform_indices = @transform_3, window_bounds = array<i64: 512, 128>}, {pipeline_mode = #tpu.pipeline_mode<synchronous>, transform_indices = @transform_4, window_bounds = array<i64: 1, 128>}, {transform_indices = @transform_5, window_bounds = array<i64: 2, 128>}]} {
    %c0 = arith.constant 0 : index
    %c0_0 = arith.constant 0 : index
    %0 = vector.load %arg1[%c0, %c0_0] : memref<2x864xf32, #tpu.memory_space<vmem>>, vector<2x864xf32>
    %1 = arith.truncf %0 : vector<2x864xf32> to vector<2x864xbf16>
    %c0_1 = arith.constant 0 : index
    %c0_2 = arith.constant 0 : index
    %2 = vector.load %arg2[%c0_1, %c0_2] : memref<864x512xbf16, #tpu.memory_space<vmem>>, vector<864x512xbf16>
    %cst = arith.constant dense<0.000000e+00> : vector<2x512xf32>
    %3 = tpu.matmul %1, %2, %cst {dimension_numbers = #tpu.dot_dimension_numbers<[1], [0], [0], [1], [0, 0, 1, 1], [], []>} : vector<2x864xbf16>, vector<864x512xbf16>, vector<2x512xf32> -> vector<2x512xf32>
    %c0_3 = arith.constant 0 : index
    %c0_4 = arith.constant 0 : index
    %4 = vector.load %arg3[%c0_3, %c0_4] : memref<1x512xf32, #tpu.memory_space<vmem>>, vector<1x512xf32>
    %5 = vector.broadcast %4 : vector<1x512xf32> to vector<2x512xf32>
    %6 = arith.addf %3, %5 : vector<2x512xf32>
    %cst_5 = arith.constant 0.00999999977 : f32
    %7 = vector.broadcast %cst_5 : f32 to vector<2x512xf32>
    %8 = arith.mulf %7, %6 : vector<2x512xf32>
    %9 = arith.maximumf %6, %8 : vector<2x512xf32>
    %10 = arith.truncf %9 : vector<2x512xf32> to vector<2x512xbf16>
    %c0_6 = arith.constant 0 : index
    %c0_7 = arith.constant 0 : index
    %11 = vector.load %arg4[%c0_6, %c0_7] : memref<512x128xbf16, #tpu.memory_space<vmem>>, vector<512x128xbf16>
    %cst_8 = arith.constant dense<0.000000e+00> : vector<2x128xf32>
    %12 = tpu.matmul %10, %11, %cst_8 {dimension_numbers = #tpu.dot_dimension_numbers<[1], [0], [0], [1], [0, 0, 1, 1], [], []>} : vector<2x512xbf16>, vector<512x128xbf16>, vector<2x128xf32> -> vector<2x128xf32>
    %c0_9 = arith.constant 0 : index
    %c0_10 = arith.constant 0 : index
    %13 = vector.load %arg5[%c0_9, %c0_10] : memref<1x128xf32, #tpu.memory_space<vmem>>, vector<1x128xf32>
    %14 = vector.broadcast %13 : vector<1x128xf32> to vector<2x128xf32>
    %15 = arith.addf %12, %14 : vector<2x128xf32>
    %c0_11 = arith.constant 0 : index
    %c0_12 = arith.constant 0 : index
    %16 = vector.load %arg6[%c0_11, %c0_12] : memref<2x128xf32, #tpu.memory_space<vmem>>, vector<2x128xf32>
    tpu.vector_store %arg6[%c0_11, %c0_12], %15 {strides = array<i32>} : memref<2x128xf32, #tpu.memory_space<vmem>>, vector<2x128xf32>,
    return
  }
  func.func @transform_0(%arg0: i32) -> (i32, i32) {
    %c0_i32 = arith.constant 0 : i32
    %c0_i32_0 = arith.constant 0 : i32
    return %arg0, %c0_i32 : i32, i32
  }
  func.func @transform_1(%arg0: i32) -> (i32, i32) {
    %c0_i32 = arith.constant 0 : i32
    %c0_i32_0 = arith.constant 0 : i32
    %c0_i32_1 = arith.constant 0 : i32
    return %c0_i32, %c0_i32_0 : i32, i32
  }
  func.func @transform_2(%arg0: i32) -> (i32, i32) {
    %c0_i32 = arith.constant 0 : i32
    %c0_i32_0 = arith.constant 0 : i32
    %c0_i32_1 = arith.constant 0 : i32
    return %c0_i32, %c0_i32_0 : i32, i32
  }
  func.func @transform_3(%arg0: i32) -> (i32, i32) {
    %c0_i32 = arith.constant 0 : i32
    %c0_i32_0 = arith.constant 0 : i32
    %c0_i32_1 = arith.constant 0 : i32
    return %c0_i32, %c0_i32_0 : i32, i32
  }
  func.func @transform_4(%arg0: i32) -> (i32, i32) {
    %c0_i32 = arith.constant 0 : i32
    %c0_i32_0 = arith.constant 0 : i32
    %c0_i32_1 = arith.constant 0 : i32
    return %c0_i32, %c0_i32_0 : i32, i32
  }
  func.func @transform_5(%arg0: i32) -> (i32, i32) {
    %c0_i32 = arith.constant 0 : i32
    %c0_i32_0 = arith.constant 0 : i32
    return %arg0, %c0_i32 : i32, i32
  }
}

</mosaic_0001>

<llo_original>
// kernel: tpu_custom_call.1
$region0: #{tpu_custom_call.1}
  #allocation0 [shape = 'u32[]', space=smem, size = 0x4, offset = 0x4, fixed_abs, tag = 'smem constant byte address 0x4 - core index']
  #allocation1 [shape = 'u32[72,128]{1,0:T(1,128)}', space=vmem, size = 0x9000, scoped, tag = 'internal scratch']
  %s0 = inlined_call_operand.hbm [shape: f32[2,864], index: 0, kind: input, shape index: {}]
  %s1 = inlined_call_operand.hbm [shape: bf16[864,512], index: 1, kind: input, shape index: {}]
  %s2 = inlined_call_operand.hbm [shape: f32[1,512], index: 2, kind: input, shape index: {}]
  %s3 = inlined_call_operand.hbm [shape: bf16[512,128], index: 3, kind: input, shape index: {}]
  %s4 = inlined_call_operand.vmem [shape: f32[1,128], index: 4, kind: input, shape index: {}]
  %s5 = inlined_call_operand.hbm [shape: f32[2,128], index: 5, kind: output, shape index: {}]
  %s6 = sld [smem:[#allocation0]]
  $region46: #{tpu_custom_call.1} parent=0
    _
  %s8 = ssub.s32 1, %s6
  %s9 = scalar_select 0, %s8, %s6
  $region1: #{tpu_custom_call.1} parent=0
    #allocation2 [shape = 'u8[7168]{0}', space=vmem, size = 0x1c00, scoped, tag = 'input window, operand 0, single buffered']
    #allocation3 [shape = 's32[1]{0}', space=sflag, size = 0x4, scoped, tag = 'scoped memory for tpu_custom_call.1']
    #allocation4 [shape = 's32[1]{0}', space=sflag, size = 0x4, scoped, tag = 'scoped memory for tpu_custom_call.1']
    #allocation5 [shape = 'u8[884736]{0}', space=vmem, size = 0xd8000, scoped, tag = 'input window, operand 1, single buffered']
    #allocation6 [shape = 's32[1]{0}', space=sflag, size = 0x4, scoped, tag = 'scoped memory for tpu_custom_call.1']
    #allocation7 [shape = 'u8[2048]{0}', space=vmem, size = 0x800, scoped, tag = 'input window, operand 2, single buffered']
    #allocation8 [shape = 'u8[131072]{0}', space=vmem, size = 0x20000, scoped, tag = 'input window, operand 3, single buffered']
    #allocation9 [shape = 's32[1]{0}', space=sflag, size = 0x4, scoped, tag = 'scoped memory for tpu_custom_call.1']
    #allocation10 [shape = 'u8[1024]{0}', space=vmem, size = 0x400, scoped, tag = 'output window, operand 0, single buffered']
    %10 = vsyncpa [#allocation3], 0
    %11 = vsyncpa [#allocation6], 0
    %12 = vsyncpa [#allocation9], 0
    %13 = vsyncpa [#allocation4], 0
    // Predicated region
    $region2: #{tpu_custom_call.1} parent=1 // pred_check
      _
    $region3: #{tpu_custom_call.1} parent=1 // pred_check_branch
      %15 = sbr.rel (0) target = $region5
    $region4: #{tpu_custom_call.1} parent=1 // pred_region
      %17 = vsyncadd [#allocation3], 0
      %s19 = sshll.u32 %s0, 4
      %s20 = int_to_ptr.hbm [resolvable:$true] %s19
      %s21 = sshll.u32 [#allocation2], 4
      %s22 = int_to_ptr.vmem [resolvable:$true] %s21
      %24 = dma.hbm_to_vmem [thread:$0]  %s20, 224, %s22, [#allocation3]
    $region5: #{tpu_custom_call.1} parent=1 // pred_fallthru
      _
    // Predicated region
    $region6: #{tpu_custom_call.1} parent=1 // pred_check
      _
    $region7: #{tpu_custom_call.1} parent=1 // pred_check_branch
      %26 = sbr.rel (0) target = $region9
    $region8: #{tpu_custom_call.1} parent=1 // pred_region
      %28 = vsyncadd [#allocation6], 0
      %s29 = sshll.u32 %s1, 4
      %s30 = int_to_ptr.hbm [resolvable:$true] %s29
      %s31 = sshll.u32 [#allocation5], 4
      %s32 = int_to_ptr.vmem [resolvable:$true] %s31
      %37 = dma.hbm_to_vmem [thread:$0]  %s30, 27648, %s32, [#allocation6], 256, 256, 16
    $region9: #{tpu_custom_call.1} parent=1 // pred_fallthru
      _
    // Predicated region
    $region10: #{tpu_custom_call.1} parent=1 // pred_check
      _
    $region11: #{tpu_custom_call.1} parent=1 // pred_check_branch
      %39 = sbr.rel (0) target = $region13
    $region12: #{tpu_custom_call.1} parent=1 // pred_region
      %41 = vsyncadd [#allocation6], 0
      %s43 = sshll.u32 %s2, 4
      %s44 = int_to_ptr.hbm [resolvable:$true] %s43
      %s45 = sshll.u32 [#allocation7], 4
      %s46 = int_to_ptr.vmem [resolvable:$true] %s45
      %48 = dma.hbm_to_vmem [thread:$0]  %s44, 64, %s46, [#allocation6]
    $region13: #{tpu_custom_call.1} parent=1 // pred_fallthru
      _
    // Predicated region
    $region14: #{tpu_custom_call.1} parent=1 // pred_check
      _
    $region15: #{tpu_custom_call.1} parent=1 // pred_check_branch
      %50 = sbr.rel (0) target = $region17
    $region16: #{tpu_custom_call.1} parent=1 // pred_region
      %52 = vsyncadd [#allocation9], 0
      %s53 = sshll.u32 %s3, 4
      %s54 = int_to_ptr.hbm [resolvable:$true] %s53
      %s55 = sshll.u32 [#allocation8], 4
      %s56 = int_to_ptr.vmem [resolvable:$true] %s55
      %61 = dma.hbm_to_vmem [thread:$0]  %s54, 4096, %s56, [#allocation9], 64, 64, 4
    $region17: #{tpu_custom_call.1} parent=1 // pred_fallthru
      _
    // Predicated region
    $region18: #{tpu_custom_call.1} parent=1 // pred_check
      _
    $region19: #{tpu_custom_call.1} parent=1 // pred_check_branch
      %63 = sbr.rel (0) target = $region21
    $region20: #{tpu_custom_call.1} parent=1 // pred_region
      _
    $region21: #{tpu_custom_call.1} parent=1 // pred_fallthru
      _
    // Predicated region
    $region22: #{tpu_custom_call.1} parent=1 // pred_check
      _
    $region23: #{tpu_custom_call.1} parent=1 // pred_check_branch
      %65 = sbr.rel (0) target = $region25
    $region24: #{tpu_custom_call.1} parent=1 // pred_region
      %67 = dma.done [#allocation3], 224
    $region25: #{tpu_custom_call.1} parent=1 // pred_fallthru
      _
    // Predicated region
    $region26: #{tpu_custom_call.1} parent=1 // pred_check
      _
    $region27: #{tpu_custom_call.1} parent=1 // pred_check_branch
      %69 = sbr.rel (0) target = $region29
    $region28: #{tpu_custom_call.1} parent=1 // pred_region
      %71 = dma.done [#allocation6], 27648
    $region29: #{tpu_custom_call.1} parent=1 // pred_fallthru
      _
    // Predicated region
    $region30: #{tpu_custom_call.1} parent=1 // pred_check
      _
    $region31: #{tpu_custom_call.1} parent=1 // pred_check_branch
      %73 = sbr.rel (0) target = $region33
    $region32: #{tpu_custom_call.1} parent=1 // pred_region
      %75 = dma.done [#allocation6], 64
    $region33: #{tpu_custom_call.1} parent=1 // pred_fallthru
      _
    // Predicated region
    $region34: #{tpu_custom_call.1} parent=1 // pred_check
      _
    $region35: #{tpu_custom_call.1} parent=1 // pred_check_branch
      %77 = sbr.rel (0) target = $region37
    $region36: #{tpu_custom_call.1} parent=1 // pred_region
      %79 = dma.done [#allocation9], 4096
    $region37: #{tpu_custom_call.1} parent=1 // pred_fallthru
      _
    %v81 = vld [vmem:[#allocation2] sm:$0xff]
    %v82 = vld [vmem:[#allocation2 + $0x8] sm:$0x3f]
    %85 = vst [vmem:[#allocation1] ss:$4 sm:$0xff] %v81
    %s86 = scalar_lea.vmem [#allocation1], 32
    %87 = vst [vmem:[%s86] ss:$4 sm:$0xff] %v82
    %v88 = vld.sshfl [vmem:[#allocation1] sm:$0xff pattern:$0x73625140]
    %v89 = vld.sshfl [vmem:[#allocation1 + $0x8] sm:$0xff pattern:$0x73625140]
    %v90 = vld.sshfl [vmem:[#allocation1 + $0x10] sm:$0xff pattern:$0x73625140]
    %v91 = vld.sshfl [vmem:[#allocation1 + $0x18] sm:$0xff pattern:$0x73625140]
    %v92 = vld.sshfl [vmem:[#allocation1 + $0x20] sm:$0xff pattern:$0x73625140]
    %v93 = vld.sshfl [vmem:[#allocation1 + $0x28] sm:$0xff pattern:$0x73625140]
    %v94 = vld.sshfl [vmem:[#allocation1 + $0x30] sm:$0xff pattern:$0x73625140]
    %v102 = vpack.c.bf16 %v88, %v88
    %v103 = vpack.c.bf16 %v89, %v89
    %v104 = vpack.c.bf16 %v90, %v90
    %v105 = vpack.c.bf16 %v91, %v91
    %v106 = vpack.c.bf16 %v92, %v92
    %v107 = vpack.c.bf16 %v93, %v93
    %v108 = vpack.c.bf16 %v94, %v94
    %v109 = vld [vmem:[#allocation5] sm:$0xff]
    %v110 = vld [vmem:[#allocation5 + $0x8] sm:$0xff]
    %v111 = vld [vmem:[#allocation5 + $0x10] sm:$0xff]
    %v112 = vld [vmem:[#allocation5 + $0x18] sm:$0xff]
    %v113 = vld [vmem:[#allocation5 + $0x20] sm:$0xff]
    %v114 = vld [vmem:[#allocation5 + $0x28] sm:$0xff]
    %v115 = vld [vmem:[#allocation5 + $0x30] sm:$0xff]
    %v116 = vld [vmem:[#allocation5 + $0x38] sm:$0xff]
    %v117 = vld [vmem:[#allocation5 + $0x40] sm:$0xff]
    %v118 = vld [vmem:[#allocation5 + $0x48] sm:$0xff]
    %v119 = vld [vmem:[#allocation5 + $0x50] sm:$0xff]
    %v120 = vld [vmem:[#allocation5 + $0x58] sm:$0xff]
    %v121 = vld [vmem:[#allocation5 + $0x60] sm:$0xff]
    %v122 = vld [vmem:[#allocation5 + $0x68] sm:$0xff]
    %v123 = vld [vmem:[#allocation5 + $0x70] sm:$0xff]
    %v124 = vld [vmem:[#allocation5 + $0x78] sm:$0xff]
    %v125 = vld [vmem:[#allocation5 + $0x80] sm:$0xff]
    %v126 = vld [vmem:[#allocation5 + $0x88] sm:$0xff]
    %v127 = vld [vmem:[#allocation5 + $0x90] sm:$0xff]
    %v128 = vld [vmem:[#allocation5 + $0x98] sm:$0xff]
    %v129 = vld [vmem:[#allocation5 + $0xa0] sm:$0xff]
    %v130 = vld [vmem:[#allocation5 + $0xa8] sm:$0xff]
    %v131 = vld [vmem:[#allocation5 + $0xb0] sm:$0xff]
    %v132 = vld [vmem:[#allocation5 + $0xb8] sm:$0xff]
    %v133 = vld [vmem:[#allocation5 + $0xc0] sm:$0xff]
    %v134 = vld [vmem:[#allocation5 + $0xc8] sm:$0xff]
    %v135 = vld [vmem:[#allocation5 + $0xd0] sm:$0xff]
    %v136 = vld [vmem:[#allocation5 + $0xd8] sm:$0xff]
    %v137 = vld [vmem:[#allocation5 + $0xe0] sm:$0xff]
    %v138 = vld [vmem:[#allocation5 + $0xe8] sm:$0xff]
    %v139 = vld [vmem:[#allocation5 + $0xf0] sm:$0xff]
    %v140 = vld [vmem:[#allocation5 + $0xf8] sm:$0xff]
    %v141 = vld [vmem:[#allocation5 + $0x100] sm:$0xff]
    %v142 = vld [vmem:[#allocation5 + $0x108] sm:$0xff]
    %v143 = vld [vmem:[#allocation5 + $0x110] sm:$0xff]
    %v144 = vld [vmem:[#allocation5 + $0x118] sm:$0xff]
    %v145 = vld [vmem:[#allocation5 + $0x120] sm:$0xff]
    %v146 = vld [vmem:[#allocation5 + $0x128] sm:$0xff]
    %v147 = vld [vmem:[#allocation5 + $0x130] sm:$0xff]
    %v148 = vld [vmem:[#allocation5 + $0x138] sm:$0xff]
    %v149 = vld [vmem:[#allocation5 + $0x140] sm:$0xff]
    %v150 = vld [vmem:[#allocation5 + $0x148] sm:$0xff]
    %v151 = vld [vmem:[#allocation5 + $0x150] sm:$0xff]
    %v152 = vld [vmem:[#allocation5 + $0x158] sm:$0xff]
    %v153 = vld [vmem:[#allocation5 + $0x160] sm:$0xff]
    %v154 = vld [vmem:[#allocation5 + $0x168] sm:$0xff]
    %v155 = vld [vmem:[#allocation5 + $0x170] sm:$0xff]
    %v156 = vld [vmem:[#allocation5 + $0x178] sm:$0xff]
    %v157 = vld [vmem:[#allocation5 + $0x180] sm:$0xff]
    %v158 = vld [vmem:[#allocation5 + $0x188] sm:$0xff]
    %v159 = vld [vmem:[#allocation5 + $0x190] sm:$0xff]
    %v160 = vld [vmem:[#allocation5 + $0x198] sm:$0xff]
    %v161 = vld [vmem:[#allocation5 + $0x1a0] sm:$0xff]
    %v162 = vld [vmem:[#allocation5 + $0x1a8] sm:$0xff]
    %v163 = vld [vmem:[#allocation5 + $0x1b0] sm:$0xff]
    %v164 = vld [vmem:[#allocation5 + $0x1b8] sm:$0xff]
    %v165 = vld [vmem:[#allocation5 + $0x1c0] sm:$0xff]
    %v166 = vld [vmem:[#allocation5 + $0x1c8] sm:$0xff]
    %v167 = vld [vmem:[#allocation5 + $0x1d0] sm:$0xff]
    %v168 = vld [vmem:[#allocation5 + $0x1d8] sm:$0xff]
    %v169 = vld [vmem:[#allocation5 + $0x1e0] sm:$0xff]
    %v170 = vld [vmem:[#allocation5 + $0x1e8] sm:$0xff]
    %v171 = vld [vmem:[#allocation5 + $0x1f0] sm:$0xff]
    %v172 = vld [vmem:[#allocation5 + $0x1f8] sm:$0xff]
    %v173 = vld [vmem:[#allocation5 + $0x200] sm:$0xff]
    %v174 = vld [vmem:[#allocation5 + $0x208] sm:$0xff]
    %v175 = vld [vmem:[#allocation5 + $0x210] sm:$0xff]
    %v176 = vld [vmem:[#allocation5 + $0x218] sm:$0xff]
    %v177 = vld [vmem:[#allocation5 + $0x220] sm:$0xff]
    %v178 = vld [vmem:[#allocation5 + $0x228] sm:$0xff]
    %v179 = vld [vmem:[#allocation5 + $0x230] sm:$0xff]
    %v180 = vld [vmem:[#allocation5 + $0x238] sm:$0xff]
    %v181 = vld [vmem:[#allocation5 + $0x240] sm:$0xff]
    %v182 = vld [vmem:[#allocation5 + $0x248] sm:$0xff]
    %v183 = vld [vmem:[#allocation5 + $0x250] sm:$0xff]
    %v184 = vld [vmem:[#allocation5 + $0x258] sm:$0xff]
    %v185 = vld [vmem:[#allocation5 + $0x260] sm:$0xff]
    %v186 = vld [vmem:[#allocation5 + $0x268] sm:$0xff]
    %v187 = vld [vmem:[#allocation5 + $0x270] sm:$0xff]
    %v188 = vld [vmem:[#allocation5 + $0x278] sm:$0xff]
    %v189 = vld [vmem:[#allocation5 + $0x280] sm:$0xff]
    %v190 = vld [vmem:[#allocation5 + $0x288] sm:$0xff]
    %v191 = vld [vmem:[#allocation5 + $0x290] sm:$0xff]
    %v192 = vld [vmem:[#allocation5 + $0x298] sm:$0xff]
    %v193 = vld [vmem:[#allocation5 + $0x2a0] sm:$0xff]
    %v194 = vld [vmem:[#allocation5 + $0x2a8] sm:$0xff]
    %v195 = vld [vmem:[#allocation5 + $0x2b0] sm:$0xff]
    %v196 = vld [vmem:[#allocation5 + $0x2b8] sm:$0xff]
    %v197 = vld [vmem:[#allocation5 + $0x2c0] sm:$0xff]
    %v198 = vld [vmem:[#allocation5 + $0x2c8] sm:$0xff]
    %v199 = vld [vmem:[#allocation5 + $0x2d0] sm:$0xff]
    %v200 = vld [vmem:[#allocation5 + $0x2d8] sm:$0xff]
    %v201 = vld [vmem:[#allocation5 + $0x2e0] sm:$0xff]
    %v202 = vld [vmem:[#allocation5 + $0x2e8] sm:$0xff]
    %v203 = vld [vmem:[#allocation5 + $0x2f0] sm:$0xff]
    %v204 = vld [vmem:[#allocation5 + $0x2f8] sm:$0xff]
    %v205 = vld [vmem:[#allocation5 + $0x300] sm:$0xff]
    %v206 = vld [vmem:[#allocation5 + $0x308] sm:$0xff]
    %v207 = vld [vmem:[#allocation5 + $0x310] sm:$0xff]
    %v208 = vld [vmem:[#allocation5 + $0x318] sm:$0xff]
    %v209 = vld [vmem:[#allocation5 + $0x320] sm:$0xff]
    %v210 = vld [vmem:[#allocation5 + $0x328] sm:$0xff]
    %v211 = vld [vmem:[#allocation5 + $0x330] sm:$0xff]
    %v212 = vld [vmem:[#allocation5 + $0x338] sm:$0xff]
    %v213 = vld [vmem:[#allocation5 + $0x340] sm:$0xff]
    %v214 = vld [vmem:[#allocation5 + $0x348] sm:$0xff]
    %v215 = vld [vmem:[#allocation5 + $0x350] sm:$0xff]
    %v216 = vld [vmem:[#allocation5 + $0x358] sm:$0xff]
    %v217 = vld [vmem:[#allocation5 + $0x360] sm:$0xff]
    %v218 = vld [vmem:[#allocation5 + $0x368] sm:$0xff]
    %v219 = vld [vmem:[#allocation5 + $0x370] sm:$0xff]
    %v220 = vld [vmem:[#allocation5 + $0x378] sm:$0xff]
    %v221 = vld [vmem:[#allocation5 + $0x380] sm:$0xff]
    %v222 = vld [vmem:[#allocation5 + $0x388] sm:$0xff]
    %v223 = vld [vmem:[#allocation5 + $0x390] sm:$0xff]
    %v224 = vld [vmem:[#allocation5 + $0x398] sm:$0xff]
    %v225 = vld [vmem:[#allocation5 + $0x3a0] sm:$0xff]
    %v226 = vld [vmem:[#allocation5 + $0x3a8] sm:$0xff]
    %v227 = vld [vmem:[#allocation5 + $0x3b0] sm:$0xff]
    %v228 = vld [vmem:[#allocation5 + $0x3b8] sm:$0xff]
    %v229 = vld [vmem:[#allocation5 + $0x3c0] sm:$0xff]
    %v230 = vld [vmem:[#allocation5 + $0x3c8] sm:$0xff]
    %v231 = vld [vmem:[#allocation5 + $0x3d0] sm:$0xff]
    %v232 = vld [vmem:[#allocation5 + $0x3d8] sm:$0xff]
    %v233 = vld [vmem:[#allocation5 + $0x3e0] sm:$0xff]
    %v234 = vld [vmem:[#allocation5 + $0x3e8] sm:$0xff]
    %v235 = vld [vmem:[#allocation5 + $0x3f0] sm:$0xff]
    %v236 = vld [vmem:[#allocation5 + $0x3f8] sm:$0xff]
    %v237 = vld [vmem:[#allocation5 + $0x400] sm:$0xff]
    %v238 = vld [vmem:[#allocation5 + $0x408] sm:$0xff]
    %v239 = vld [vmem:[#allocation5 + $0x410] sm:$0xff]
    %v240 = vld [vmem:[#allocation5 + $0x418] sm:$0xff]
    %v241 = vld [vmem:[#allocation5 + $0x420] sm:$0xff]
    %v242 = vld [vmem:[#allocation5 + $0x428] sm:$0xff]
    %v243 = vld [vmem:[#allocation5 + $0x430] sm:$0xff]
    %v244 = vld [vmem:[#allocation5 + $0x438] sm:$0xff]
    %v245 = vld [vmem:[#allocation5 + $0x440] sm:$0xff]
    %v246 = vld [vmem:[#allocation5 + $0x448] sm:$0xff]
    %v247 = vld [vmem:[#allocation5 + $0x450] sm:$0xff]
    %v248 = vld [vmem:[#allocation5 + $0x458] sm:$0xff]
    %v249 = vld [vmem:[#allocation5 + $0x460] sm:$0xff]
    %v250 = vld [vmem:[#allocation5 + $0x468] sm:$0xff]
    %v251 = vld [vmem:[#allocation5 + $0x470] sm:$0xff]
    %v252 = vld [vmem:[#allocation5 + $0x478] sm:$0xff]
    %v253 = vld [vmem:[#allocation5 + $0x480] sm:$0xff]
    %v254 = vld [vmem:[#allocation5 + $0x488] sm:$0xff]
    %v255 = vld [vmem:[#allocation5 + $0x490] sm:$0xff]
    %v256 = vld [vmem:[#allocation5 + $0x498] sm:$0xff]
    %v257 = vld [vmem:[#allocation5 + $0x4a0] sm:$0xff]
    %v258 = vld [vmem:[#allocation5 + $0x4a8] sm:$0xff]
    %v259 = vld [vmem:[#allocation5 + $0x4b0] sm:$0xff]
    %v260 = vld [vmem:[#allocation5 + $0x4b8] sm:$0xff]
    %v261 = vld [vmem:[#allocation5 + $0x4c0] sm:$0xff]
    %v262 = vld [vmem:[#allocation5 + $0x4c8] sm:$0xff]
    %v263 = vld [vmem:[#allocation5 + $0x4d0] sm:$0xff]
    %v264 = vld [vmem:[#allocation5 + $0x4d8] sm:$0xff]
    %v265 = vld [vmem:[#allocation5 + $0x4e0] sm:$0xff]
    %v266 = vld [vmem:[#allocation5 + $0x4e8] sm:$0xff]
    %v267 = vld [vmem:[#allocation5 + $0x4f0] sm:$0xff]
    %v268 = vld [vmem:[#allocation5 + $0x4f8] sm:$0xff]
    %v269 = vld [vmem:[#allocation5 + $0x500] sm:$0xff]
    %v270 = vld [vmem:[#allocation5 + $0x508] sm:$0xff]
    %v271 = vld [vmem:[#allocation5 + $0x510] sm:$0xff]
    %v272 = vld [vmem:[#allocation5 + $0x518] sm:$0xff]
    %v273 = vld [vmem:[#allocation5 + $0x520] sm:$0xff]
    %v274 = vld [vmem:[#allocation5 + $0x528] sm:$0xff]
    %v275 = vld [vmem:[#allocation5 + $0x530] sm:$0xff]
    %v276 = vld [vmem:[#allocation5 + $0x538] sm:$0xff]
    %v277 = vld [vmem:[#allocation5 + $0x540] sm:$0xff]
    %v278 = vld [vmem:[#allocation5 + $0x548] sm:$0xff]
    %v279 = vld [vmem:[#allocation5 + $0x550] sm:$0xff]
    %v280 = vld [vmem:[#allocation5 + $0x558] sm:$0xff]
    %v281 = vld [vmem:[#allocation5 + $0x560] sm:$0xff]
    %v282 = vld [vmem:[#allocation5 + $0x568] sm:$0xff]
    %v283 = vld [vmem:[#allocation5 + $0x570] sm:$0xff]
    %v284 = vld [vmem:[#allocation5 + $0x578] sm:$0xff]
    %v285 = vld [vmem:[#allocation5 + $0x580] sm:$0xff]
    %v286 = vld [vmem:[#allocation5 + $0x588] sm:$0xff]
    %v287 = vld [vmem:[#allocation5 + $0x590] sm:$0xff]
    %v288 = vld [vmem:[#allocation5 + $0x598] sm:$0xff]
    %v289 = vld [vmem:[#allocation5 + $0x5a0] sm:$0xff]
    %v290 = vld [vmem:[#allocation5 + $0x5a8] sm:$0xff]
    %v291 = vld [vmem:[#allocation5 + $0x5b0] sm:$0xff]
    %v292 = vld [vmem:[#allocation5 + $0x5b8] sm:$0xff]
    %v293 = vld [vmem:[#allocation5 + $0x5c0] sm:$0xff]
    %v294 = vld [vmem:[#allocation5 + $0x5c8] sm:$0xff]
    %v295 = vld [vmem:[#allocation5 + $0x5d0] sm:$0xff]
    %v296 = vld [vmem:[#allocation5 + $0x5d8] sm:$0xff]
    %v297 = vld [vmem:[#allocation5 + $0x5e0] sm:$0xff]
    %v298 = vld [vmem:[#allocation5 + $0x5e8] sm:$0xff]
    %v299 = vld [vmem:[#allocation5 + $0x5f0] sm:$0xff]
    %v300 = vld [vmem:[#allocation5 + $0x5f8] sm:$0xff]
    %v301 = vld [vmem:[#allocation5 + $0x600] sm:$0xff]
    %v302 = vld [vmem:[#allocation5 + $0x608] sm:$0xff]
    %v303 = vld [vmem:[#allocation5 + $0x610] sm:$0xff]
    %v304 = vld [vmem:[#allocation5 + $0x618] sm:$0xff]
    %v305 = vld [vmem:[#allocation5 + $0x620] sm:$0xff]
    %v306 = vld [vmem:[#allocation5 + $0x628] sm:$0xff]
    %v307 = vld [vmem:[#allocation5 + $0x630] sm:$0xff]
    %v308 = vld [vmem:[#allocation5 + $0x638] sm:$0xff]
    %v309 = vld [vmem:[#allocation5 + $0x640] sm:$0xff]
    %v310 = vld [vmem:[#allocation5 + $0x648] sm:$0xff]
    %v311 = vld [vmem:[#allocation5 + $0x650] sm:$0xff]
    %v312 = vld [vmem:[#allocation5 + $0x658] sm:$0xff]
    %v313 = vld [vmem:[#allocation5 + $0x660] sm:$0xff]
    %v314 = vld [vmem:[#allocation5 + $0x668] sm:$0xff]
    %v315 = vld [vmem:[#allocation5 + $0x670] sm:$0xff]
    %v316 = vld [vmem:[#allocation5 + $0x678] sm:$0xff]
    %v317 = vld [vmem:[#allocation5 + $0x680] sm:$0xff]
    %v318 = vld [vmem:[#allocation5 + $0x688] sm:$0xff]
    %v319 = vld [vmem:[#allocation5 + $0x690] sm:$0xff]
    %v320 = vld [vmem:[#allocation5 + $0x698] sm:$0xff]
    %v321 = vld [vmem:[#allocation5 + $0x6a0] sm:$0xff]
    %v322 = vld [vmem:[#allocation5 + $0x6a8] sm:$0xff]
    %v323 = vld [vmem:[#allocation5 + $0x6b0] sm:$0xff]
    %v324 = vld [vmem:[#allocation5 + $0x6b8] sm:$0xff]
    %v325 = vld [vmem:[#allocation7] sm:$0xf]
    %v327 = vperm.slane %v325, 0
    %v328 = vperm.slane %v325, 1
    %v329 = vperm.slane %v325, 2
    %v330 = vperm.slane %v325, 3
    %v551 = vunpack.c.l.b16 %v109
    %v552 = vunpack.c.h.b16 %v109
    %v553 = vunpack.c.l.b16 %v110
    %v554 = vunpack.c.h.b16 %v110
    %v555 = vunpack.c.l.b16 %v111
    %v556 = vunpack.c.h.b16 %v111
    %v557 = vunpack.c.l.b16 %v112
    %v558 = vunpack.c.h.b16 %v112
    %v559 = vunpack.c.l.b16 %v113
    %v560 = vunpack.c.h.b16 %v113
    %v561 = vunpack.c.l.b16 %v114
    %v562 = vunpack.c.h.b16 %v114
    %v563 = vunpack.c.l.b16 %v115
    %v564 = vunpack.c.h.b16 %v115
    %v565 = vunpack.c.l.b16 %v116
    %v566 = vunpack.c.h.b16 %v116
    %v567 = vunpack.c.l.b16 %v117
    %v568 = vunpack.c.h.b16 %v117
    %v569 = vunpack.c.l.b16 %v118
    %v570 = vunpack.c.h.b16 %v118
    %v571 = vunpack.c.l.b16 %v119
    %v572 = vunpack.c.h.b16 %v119
    %v573 = vunpack.c.l.b16 %v120
    %v574 = vunpack.c.h.b16 %v120
    %v575 = vunpack.c.l.b16 %v121
    %v576 = vunpack.c.h.b16 %v121
    %v577 = vunpack.c.l.b16 %v122
    %v578 = vunpack.c.h.b16 %v122
    %v579 = vunpack.c.l.b16 %v123
    %v580 = vunpack.c.h.b16 %v123
    %v581 = vunpack.c.l.b16 %v124
    %v582 = vunpack.c.h.b16 %v124
    %v583 = vunpack.c.l.b16 %v125
    %v584 = vunpack.c.h.b16 %v125
    %v585 = vunpack.c.l.b16 %v126
    %v586 = vunpack.c.h.b16 %v126
    %v587 = vunpack.c.l.b16 %v127
    %v588 = vunpack.c.h.b16 %v127
    %v589 = vunpack.c.l.b16 %v128
    %v590 = vunpack.c.h.b16 %v128
    %v591 = vunpack.c.l.b16 %v129
    %v592 = vunpack.c.h.b16 %v129
    %v593 = vunpack.c.l.b16 %v130
    %v594 = vunpack.c.h.b16 %v130
    %v595 = vunpack.c.l.b16 %v131
    %v596 = vunpack.c.h.b16 %v131
    %v597 = vunpack.c.l.b16 %v132
    %v598 = vunpack.c.h.b16 %v132
    %v599 = vunpack.c.l.b16 %v133
    %v600 = vunpack.c.h.b16 %v133
    %v601 = vunpack.c.l.b16 %v134
    %v602 = vunpack.c.h.b16 %v134
    %v603 = vunpack.c.l.b16 %v135
    %v604 = vunpack.c.h.b16 %v135
    %v605 = vunpack.c.l.b16 %v136
    %v606 = vunpack.c.h.b16 %v136
    %v607 = vunpack.c.l.b16 %v137
    %v608 = vunpack.c.h.b16 %v137
    %v609 = vunpack.c.l.b16 %v138
    %v610 = vunpack.c.h.b16 %v138
    %v611 = vunpack.c.l.b16 %v139
    %v612 = vunpack.c.h.b16 %v139
    %v613 = vunpack.c.l.b16 %v140
    %v614 = vunpack.c.h.b16 %v140
    %v615 = vunpack.c.l.b16 %v141
    %v616 = vunpack.c.h.b16 %v141
    %v617 = vunpack.c.l.b16 %v142
    %v618 = vunpack.c.h.b16 %v142
    %v619 = vunpack.c.l.b16 %v143
    %v620 = vunpack.c.h.b16 %v143
    %v621 = vunpack.c.l.b16 %v144
    %v622 = vunpack.c.h.b16 %v144
    %v623 = vunpack.c.l.b16 %v145
    %v624 = vunpack.c.h.b16 %v145
    %v625 = vunpack.c.l.b16 %v146
    %v626 = vunpack.c.h.b16 %v146
    %v627 = vunpack.c.l.b16 %v147
    %v628 = vunpack.c.h.b16 %v147
    %v629 = vunpack.c.l.b16 %v148
    %v630 = vunpack.c.h.b16 %v148
    %v631 = vunpack.c.l.b16 %v149
    %v632 = vunpack.c.h.b16 %v149
    %v633 = vunpack.c.l.b16 %v150
    %v634 = vunpack.c.h.b16 %v150
    %v635 = vunpack.c.l.b16 %v151
    %v636 = vunpack.c.h.b16 %v151
    %v637 = vunpack.c.l.b16 %v152
    %v638 = vunpack.c.h.b16 %v152
    %v639 = vunpack.c.l.b16 %v153
    %v640 = vunpack.c.h.b16 %v153
    %v641 = vunpack.c.l.b16 %v154
    %v642 = vunpack.c.h.b16 %v154
    %v643 = vunpack.c.l.b16 %v155
    %v644 = vunpack.c.h.b16 %v155
    %v645 = vunpack.c.l.b16 %v156
    %v646 = vunpack.c.h.b16 %v156
    %v647 = vunpack.c.l.b16 %v157
    %v648 = vunpack.c.h.b16 %v157
    %v649 = vunpack.c.l.b16 %v158
    %v650 = vunpack.c.h.b16 %v158
    %v651 = vunpack.c.l.b16 %v159
    %v652 = vunpack.c.h.b16 %v159
    %v653 = vunpack.c.l.b16 %v160
    %v654 = vunpack.c.h.b16 %v160
    %v655 = vunpack.c.l.b16 %v161
    %v656 = vunpack.c.h.b16 %v161
    %v657 = vunpack.c.l.b16 %v162
    %v658 = vunpack.c.h.b16 %v162
    %v659 = vunpack.c.l.b16 %v163
    %v660 = vunpack.c.h.b16 %v163
    %v661 = vunpack.c.l.b16 %v164
    %v662 = vunpack.c.h.b16 %v164
    %v663 = vunpack.c.l.b16 %v165
    %v664 = vunpack.c.h.b16 %v165
    %v665 = vunpack.c.l.b16 %v166
    %v666 = vunpack.c.h.b16 %v166
    %v667 = vunpack.c.l.b16 %v167
    %v668 = vunpack.c.h.b16 %v167
    %v669 = vunpack.c.l.b16 %v168
    %v670 = vunpack.c.h.b16 %v168
    %v671 = vunpack.c.l.b16 %v169
    %v672 = vunpack.c.h.b16 %v169
    %v673 = vunpack.c.l.b16 %v170
    %v674 = vunpack.c.h.b16 %v170
    %v675 = vunpack.c.l.b16 %v171
    %v676 = vunpack.c.h.b16 %v171
    %v677 = vunpack.c.l.b16 %v172
    %v678 = vunpack.c.h.b16 %v172
    %v679 = vunpack.c.l.b16 %v173
    %v680 = vunpack.c.h.b16 %v173
    %v681 = vunpack.c.l.b16 %v174
    %v682 = vunpack.c.h.b16 %v174
    %v683 = vunpack.c.l.b16 %v175
    %v684 = vunpack.c.h.b16 %v175
    %v685 = vunpack.c.l.b16 %v176
    %v686 = vunpack.c.h.b16 %v176
    %v687 = vunpack.c.l.b16 %v177
    %v688 = vunpack.c.h.b16 %v177
    %v689 = vunpack.c.l.b16 %v178
    %v690 = vunpack.c.h.b16 %v178
    %v691 = vunpack.c.l.b16 %v179
    %v692 = vunpack.c.h.b16 %v179
    %v693 = vunpack.c.l.b16 %v180
    %v694 = vunpack.c.h.b16 %v180
    %v695 = vunpack.c.l.b16 %v181
    %v696 = vunpack.c.h.b16 %v181
    %v697 = vunpack.c.l.b16 %v182
    %v698 = vunpack.c.h.b16 %v182
    %v699 = vunpack.c.l.b16 %v183
    %v700 = vunpack.c.h.b16 %v183
    %v701 = vunpack.c.l.b16 %v184
    %v702 = vunpack.c.h.b16 %v184
    %v703 = vunpack.c.l.b16 %v185
    %v704 = vunpack.c.h.b16 %v185
    %v705 = vunpack.c.l.b16 %v186
    %v706 = vunpack.c.h.b16 %v186
    %v707 = vunpack.c.l.b16 %v187
    %v708 = vunpack.c.h.b16 %v187
    %v709 = vunpack.c.l.b16 %v188
    %v710 = vunpack.c.h.b16 %v188
    %v711 = vunpack.c.l.b16 %v189
    %v712 = vunpack.c.h.b16 %v189
    %v713 = vunpack.c.l.b16 %v190
    %v714 = vunpack.c.h.b16 %v190
    %v715 = vunpack.c.l.b16 %v191
    %v716 = vunpack.c.h.b16 %v191
    %v717 = vunpack.c.l.b16 %v192
    %v718 = vunpack.c.h.b16 %v192
    %v719 = vunpack.c.l.b16 %v193
    %v720 = vunpack.c.h.b16 %v193
    %v721 = vunpack.c.l.b16 %v194
    %v722 = vunpack.c.h.b16 %v194
    %v723 = vunpack.c.l.b16 %v195
    %v724 = vunpack.c.h.b16 %v195
    %v725 = vunpack.c.l.b16 %v196
    %v726 = vunpack.c.h.b16 %v196
    %v727 = vunpack.c.l.b16 %v197
    %v728 = vunpack.c.h.b16 %v197
    %v729 = vunpack.c.l.b16 %v198
    %v730 = vunpack.c.h.b16 %v198
    %v731 = vunpack.c.l.b16 %v199
    %v732 = vunpack.c.h.b16 %v199
    %v733 = vunpack.c.l.b16 %v200
    %v734 = vunpack.c.h.b16 %v200
    %v735 = vunpack.c.l.b16 %v201
    %v736 = vunpack.c.h.b16 %v201
    %v737 = vunpack.c.l.b16 %v202
    %v738 = vunpack.c.h.b16 %v202
    %v739 = vunpack.c.l.b16 %v203
    %v740 = vunpack.c.h.b16 %v203
    %v741 = vunpack.c.l.b16 %v204
    %v742 = vunpack.c.h.b16 %v204
    %v743 = vunpack.c.l.b16 %v205
    %v744 = vunpack.c.h.b16 %v205
    %v745 = vunpack.c.l.b16 %v206
    %v746 = vunpack.c.h.b16 %v206
    %v747 = vunpack.c.l.b16 %v207
    %v748 = vunpack.c.h.b16 %v207
    %v749 = vunpack.c.l.b16 %v208
    %v750 = vunpack.c.h.b16 %v208
    %v751 = vunpack.c.l.b16 %v209
    %v752 = vunpack.c.h.b16 %v209
    %v753 = vunpack.c.l.b16 %v210
    %v754 = vunpack.c.h.b16 %v210
    %v755 = vunpack.c.l.b16 %v211
    %v756 = vunpack.c.h.b16 %v211
    %v757 = vunpack.c.l.b16 %v212
    %v758 = vunpack.c.h.b16 %v212
    %v759 = vunpack.c.l.b16 %v213
    %v760 = vunpack.c.h.b16 %v213
    %v761 = vunpack.c.l.b16 %v214
    %v762 = vunpack.c.h.b16 %v214
    %v763 = vunpack.c.l.b16 %v215
    %v764 = vunpack.c.h.b16 %v215
    %v765 = vunpack.c.l.b16 %v216
    %v766 = vunpack.c.h.b16 %v216
    %v767 = vunpack.c.l.b16 %v217
    %v768 = vunpack.c.h.b16 %v217
    %v769 = vunpack.c.l.b16 %v218
    %v770 = vunpack.c.h.b16 %v218
    %v771 = vunpack.c.l.b16 %v219
    %v772 = vunpack.c.h.b16 %v219
    %v773 = vunpack.c.l.b16 %v220
    %v774 = vunpack.c.h.b16 %v220
    %v775 = vunpack.c.l.b16 %v221
    %v776 = vunpack.c.h.b16 %v221
    %v777 = vunpack.c.l.b16 %v222
    %v778 = vunpack.c.h.b16 %v222
    %v779 = vunpack.c.l.b16 %v223
    %v780 = vunpack.c.h.b16 %v223
    %v781 = vunpack.c.l.b16 %v224
    %v782 = vunpack.c.h.b16 %v224
    %v783 = vunpack.c.l.b16 %v225
    %v784 = vunpack.c.h.b16 %v225
    %v785 = vunpack.c.l.b16 %v226
    %v786 = vunpack.c.h.b16 %v226
    %v787 = vunpack.c.l.b16 %v227
    %v788 = vunpack.c.h.b16 %v227
    %v789 = vunpack.c.l.b16 %v228
    %v790 = vunpack.c.h.b16 %v228
    %v791 = vunpack.c.l.b16 %v229
    %v792 = vunpack.c.h.b16 %v229
    %v793 = vunpack.c.l.b16 %v230
    %v794 = vunpack.c.h.b16 %v230
    %v795 = vunpack.c.l.b16 %v231
    %v796 = vunpack.c.h.b16 %v231
    %v797 = vunpack.c.l.b16 %v232
    %v798 = vunpack.c.h.b16 %v232
    %v799 = vunpack.c.l.b16 %v233
    %v800 = vunpack.c.h.b16 %v233
    %v801 = vunpack.c.l.b16 %v234
    %v802 = vunpack.c.h.b16 %v234
    %v803 = vunpack.c.l.b16 %v235
    %v804 = vunpack.c.h.b16 %v235
    %v805 = vunpack.c.l.b16 %v236
    %v806 = vunpack.c.h.b16 %v236
    %v807 = vunpack.c.l.b16 %v237
    %v808 = vunpack.c.h.b16 %v237
    %v809 = vunpack.c.l.b16 %v238
    %v810 = vunpack.c.h.b16 %v238
    %v811 = vunpack.c.l.b16 %v239
    %v812 = vunpack.c.h.b16 %v239
    %v813 = vunpack.c.l.b16 %v240
    %v814 = vunpack.c.h.b16 %v240
    %v815 = vunpack.c.l.b16 %v241
    %v816 = vunpack.c.h.b16 %v241
    %v817 = vunpack.c.l.b16 %v242
    %v818 = vunpack.c.h.b16 %v242
    %v819 = vunpack.c.l.b16 %v243
    %v820 = vunpack.c.h.b16 %v243
    %v821 = vunpack.c.l.b16 %v244
    %v822 = vunpack.c.h.b16 %v244
    %v823 = vunpack.c.l.b16 %v245
    %v824 = vunpack.c.h.b16 %v245
    %v825 = vunpack.c.l.b16 %v246
    %v826 = vunpack.c.h.b16 %v246
    %v827 = vunpack.c.l.b16 %v247
    %v828 = vunpack.c.h.b16 %v247
    %v829 = vunpack.c.l.b16 %v248
    %v830 = vunpack.c.h.b16 %v248
    %v831 = vunpack.c.l.b16 %v249
    %v832 = vunpack.c.h.b16 %v249
    %v833 = vunpack.c.l.b16 %v250
    %v834 = vunpack.c.h.b16 %v250
    %v835 = vunpack.c.l.b16 %v251
    %v836 = vunpack.c.h.b16 %v251
    %v837 = vunpack.c.l.b16 %v252
    %v838 = vunpack.c.h.b16 %v252
    %v839 = vunpack.c.l.b16 %v253
    %v840 = vunpack.c.h.b16 %v253
    %v841 = vunpack.c.l.b16 %v254
    %v842 = vunpack.c.h.b16 %v254
    %v843 = vunpack.c.l.b16 %v255
    %v844 = vunpack.c.h.b16 %v255
    %v845 = vunpack.c.l.b16 %v256
    %v846 = vunpack.c.h.b16 %v256
    %v847 = vunpack.c.l.b16 %v257
    %v848 = vunpack.c.h.b16 %v257
    %v849 = vunpack.c.l.b16 %v258
    %v850 = vunpack.c.h.b16 %v258
    %v851 = vunpack.c.l.b16 %v259
    %v852 = vunpack.c.h.b16 %v259
    %v853 = vunpack.c.l.b16 %v260
    %v854 = vunpack.c.h.b16 %v260
    %v855 = vunpack.c.l.b16 %v261
    %v856 = vunpack.c.h.b16 %v261
    %v857 = vunpack.c.l.b16 %v262
    %v858 = vunpack.c.h.b16 %v262
    %v859 = vunpack.c.l.b16 %v263
    %v860 = vunpack.c.h.b16 %v263
    %v861 = vunpack.c.l.b16 %v264
    %v862 = vunpack.c.h.b16 %v264
    %v863 = vunpack.c.l.b16 %v265
    %v864 = vunpack.c.h.b16 %v265
    %v865 = vunpack.c.l.b16 %v266
    %v866 = vunpack.c.h.b16 %v266
    %v867 = vunpack.c.l.b16 %v267
    %v868 = vunpack.c.h.b16 %v267
    %v869 = vunpack.c.l.b16 %v268
    %v870 = vunpack.c.h.b16 %v268
    %v871 = vunpack.c.l.b16 %v269
    %v872 = vunpack.c.h.b16 %v269
    %v873 = vunpack.c.l.b16 %v270
    %v874 = vunpack.c.h.b16 %v270
    %v875 = vunpack.c.l.b16 %v271
    %v876 = vunpack.c.h.b16 %v271
    %v877 = vunpack.c.l.b16 %v272
    %v878 = vunpack.c.h.b16 %v272
    %v879 = vunpack.c.l.b16 %v273
    %v880 = vunpack.c.h.b16 %v273
    %v881 = vunpack.c.l.b16 %v274
    %v882 = vunpack.c.h.b16 %v274
    %v883 = vunpack.c.l.b16 %v275
    %v884 = vunpack.c.h.b16 %v275
    %v885 = vunpack.c.l.b16 %v276
    %v886 = vunpack.c.h.b16 %v276
    %v887 = vunpack.c.l.b16 %v277
    %v888 = vunpack.c.h.b16 %v277
    %v889 = vunpack.c.l.b16 %v278
    %v890 = vunpack.c.h.b16 %v278
    %v891 = vunpack.c.l.b16 %v279
    %v892 = vunpack.c.h.b16 %v279
    %v893 = vunpack.c.l.b16 %v280
    %v894 = vunpack.c.h.b16 %v280
    %v895 = vunpack.c.l.b16 %v281
    %v896 = vunpack.c.h.b16 %v281
    %v897 = vunpack.c.l.b16 %v282
    %v898 = vunpack.c.h.b16 %v282
    %v899 = vunpack.c.l.b16 %v283
    %v900 = vunpack.c.h.b16 %v283
    %v901 = vunpack.c.l.b16 %v284
    %v902 = vunpack.c.h.b16 %v284
    %v903 = vunpack.c.l.b16 %v285
    %v904 = vunpack.c.h.b16 %v285
    %v905 = vunpack.c.l.b16 %v286
    %v906 = vunpack.c.h.b16 %v286
    %v907 = vunpack.c.l.b16 %v287
    %v908 = vunpack.c.h.b16 %v287
    %v909 = vunpack.c.l.b16 %v288
    %v910 = vunpack.c.h.b16 %v288
    %v911 = vunpack.c.l.b16 %v289
    %v912 = vunpack.c.h.b16 %v289
    %v913 = vunpack.c.l.b16 %v290
    %v914 = vunpack.c.h.b16 %v290
    %v915 = vunpack.c.l.b16 %v291
    %v916 = vunpack.c.h.b16 %v291
    %v917 = vunpack.c.l.b16 %v292
    %v918 = vunpack.c.h.b16 %v292
    %v919 = vunpack.c.l.b16 %v293
    %v920 = vunpack.c.h.b16 %v293
    %v921 = vunpack.c.l.b16 %v294
    %v922 = vunpack.c.h.b16 %v294
    %v923 = vunpack.c.l.b16 %v295
    %v924 = vunpack.c.h.b16 %v295
    %v925 = vunpack.c.l.b16 %v296
    %v926 = vunpack.c.h.b16 %v296
    %v927 = vunpack.c.l.b16 %v297
    %v928 = vunpack.c.h.b16 %v297
    %v929 = vunpack.c.l.b16 %v298
    %v930 = vunpack.c.h.b16 %v298
    %v931 = vunpack.c.l.b16 %v299
    %v932 = vunpack.c.h.b16 %v299
    %v933 = vunpack.c.l.b16 %v300
    %v934 = vunpack.c.h.b16 %v300
    %v935 = vunpack.c.l.b16 %v301
    %v936 = vunpack.c.h.b16 %v301
    %v937 = vunpack.c.l.b16 %v302
    %v938 = vunpack.c.h.b16 %v302
    %v939 = vunpack.c.l.b16 %v303
    %v940 = vunpack.c.h.b16 %v303
    %v941 = vunpack.c.l.b16 %v304
    %v942 = vunpack.c.h.b16 %v304
    %v943 = vunpack.c.l.b16 %v305
    %v944 = vunpack.c.h.b16 %v305
    %v945 = vunpack.c.l.b16 %v306
    %v946 = vunpack.c.h.b16 %v306
    %v947 = vunpack.c.l.b16 %v307
    %v948 = vunpack.c.h.b16 %v307
    %v949 = vunpack.c.l.b16 %v308
    %v950 = vunpack.c.h.b16 %v308
    %v951 = vunpack.c.l.b16 %v309
    %v952 = vunpack.c.h.b16 %v309
    %v953 = vunpack.c.l.b16 %v310
    %v954 = vunpack.c.h.b16 %v310
    %v955 = vunpack.c.l.b16 %v311
    %v956 = vunpack.c.h.b16 %v311
    %v957 = vunpack.c.l.b16 %v312
    %v958 = vunpack.c.h.b16 %v312
    %v959 = vunpack.c.l.b16 %v313
    %v960 = vunpack.c.h.b16 %v313
    %v961 = vunpack.c.l.b16 %v314
    %v962 = vunpack.c.h.b16 %v314
    %v963 = vunpack.c.l.b16 %v315
    %v964 = vunpack.c.h.b16 %v315
    %v965 = vunpack.c.l.b16 %v316
    %v966 = vunpack.c.h.b16 %v316
    %v967 = vunpack.c.l.b16 %v317
    %v968 = vunpack.c.h.b16 %v317
    %v969 = vunpack.c.l.b16 %v318
    %v970 = vunpack.c.h.b16 %v318
    %v971 = vunpack.c.l.b16 %v319
    %v972 = vunpack.c.h.b16 %v319
    %v973 = vunpack.c.l.b16 %v320
    %v974 = vunpack.c.h.b16 %v320
    %v975 = vunpack.c.l.b16 %v321
    %v976 = vunpack.c.h.b16 %v321
    %v977 = vunpack.c.l.b16 %v322
    %v978 = vunpack.c.h.b16 %v322
    %v979 = vunpack.c.l.b16 %v323
    %v980 = vunpack.c.h.b16 %v323
    %v981 = vunpack.c.l.b16 %v324
    %v982 = vunpack.c.h.b16 %v324
    %v983 = vpack.c.b16 %v555, %v551
    %v984 = vpack.c.b16 %v556, %v552
    %v985 = vpack.c.b16 %v557, %v553
    %v986 = vpack.c.b16 %v558, %v554
    %v987 = vpack.c.b16 %v563, %v559
    %v988 = vpack.c.b16 %v564, %v560
    %v989 = vpack.c.b16 %v565, %v561
    %v990 = vpack.c.b16 %v566, %v562
    %v991 = vpack.c.b16 %v571, %v567
    %v992 = vpack.c.b16 %v572, %v568
    %v993 = vpack.c.b16 %v573, %v569
    %v994 = vpack.c.b16 %v574, %v570
    %v995 = vpack.c.b16 %v579, %v575
    %v996 = vpack.c.b16 %v580, %v576
    %v997 = vpack.c.b16 %v581, %v577
    %v998 = vpack.c.b16 %v582, %v578
    %v999 = vpack.c.b16 %v587, %v583
    %v1000 = vpack.c.b16 %v588, %v584
    %v1001 = vpack.c.b16 %v589, %v585
    %v1002 = vpack.c.b16 %v590, %v586
    %v1003 = vpack.c.b16 %v595, %v591
    %v1004 = vpack.c.b16 %v596, %v592
    %v1005 = vpack.c.b16 %v597, %v593
    %v1006 = vpack.c.b16 %v598, %v594
    %v1007 = vpack.c.b16 %v603, %v599
    %v1008 = vpack.c.b16 %v604, %v600
    %v1009 = vpack.c.b16 %v605, %v601
    %v1010 = vpack.c.b16 %v606, %v602
    %v1011 = vpack.c.b16 %v611, %v607
    %v1012 = vpack.c.b16 %v612, %v608
    %v1013 = vpack.c.b16 %v613, %v609
    %v1014 = vpack.c.b16 %v614, %v610
    %v1015 = vpack.c.b16 %v619, %v615
    %v1016 = vpack.c.b16 %v620, %v616
    %v1017 = vpack.c.b16 %v621, %v617
    %v1018 = vpack.c.b16 %v622, %v618
    %v1019 = vpack.c.b16 %v627, %v623
    %v1020 = vpack.c.b16 %v628, %v624
    %v1021 = vpack.c.b16 %v629, %v625
    %v1022 = vpack.c.b16 %v630, %v626
    %v1023 = vpack.c.b16 %v635, %v631
    %v1024 = vpack.c.b16 %v636, %v632
    %v1025 = vpack.c.b16 %v637, %v633
    %v1026 = vpack.c.b16 %v638, %v634
    %v1027 = vpack.c.b16 %v643, %v639
    %v1028 = vpack.c.b16 %v644, %v640
    %v1029 = vpack.c.b16 %v645, %v641
    %v1030 = vpack.c.b16 %v646, %v642
    %v1031 = vpack.c.b16 %v651, %v647
    %v1032 = vpack.c.b16 %v652, %v648
    %v1033 = vpack.c.b16 %v653, %v649
    %v1034 = vpack.c.b16 %v654, %v650
    %v1035 = vpack.c.b16 %v659, %v655
    %v1036 = vpack.c.b16 %v660, %v656
    %v1037 = vpack.c.b16 %v661, %v657
    %v1038 = vpack.c.b16 %v662, %v658
    %v1039 = vpack.c.b16 %v667, %v663
    %v1040 = vpack.c.b16 %v668, %v664
    %v1041 = vpack.c.b16 %v669, %v665
    %v1042 = vpack.c.b16 %v670, %v666
    %v1043 = vpack.c.b16 %v675, %v671
    %v1044 = vpack.c.b16 %v676, %v672
    %v1045 = vpack.c.b16 %v677, %v673
    %v1046 = vpack.c.b16 %v678, %v674
    %v1047 = vpack.c.b16 %v683, %v679
    %v1048 = vpack.c.b16 %v684, %v680
    %v1049 = vpack.c.b16 %v685, %v681
    %v1050 = vpack.c.b16 %v686, %v682
    %v1051 = vpack.c.b16 %v691, %v687
    %v1052 = vpack.c.b16 %v692, %v688
    %v1053 = vpack.c.b16 %v693, %v689
    %v1054 = vpack.c.b16 %v694, %v690
    %v1055 = vpack.c.b16 %v699, %v695
    %v1056 = vpack.c.b16 %v700, %v696
    %v1057 = vpack.c.b16 %v701, %v697
    %v1058 = vpack.c.b16 %v702, %v698
    %v1059 = vpack.c.b16 %v707, %v703
    %v1060 = vpack.c.b16 %v708, %v704
    %v1061 = vpack.c.b16 %v709, %v705
    %v1062 = vpack.c.b16 %v710, %v706
    %v1063 = vpack.c.b16 %v715, %v711
    %v1064 = vpack.c.b16 %v716, %v712
    %v1065 = vpack.c.b16 %v717, %v713
    %v1066 = vpack.c.b16 %v718, %v714
    %v1067 = vpack.c.b16 %v723, %v719
    %v1068 = vpack.c.b16 %v724, %v720
    %v1069 = vpack.c.b16 %v725, %v721
    %v1070 = vpack.c.b16 %v726, %v722
    %v1071 = vpack.c.b16 %v731, %v727
    %v1072 = vpack.c.b16 %v732, %v728
    %v1073 = vpack.c.b16 %v733, %v729
    %v1074 = vpack.c.b16 %v734, %v730
    %v1075 = vpack.c.b16 %v739, %v735
    %v1076 = vpack.c.b16 %v740, %v736
    %v1077 = vpack.c.b16 %v741, %v737
    %v1078 = vpack.c.b16 %v742, %v738
    %v1079 = vpack.c.b16 %v747, %v743
    %v1080 = vpack.c.b16 %v748, %v744
    %v1081 = vpack.c.b16 %v749, %v745
    %v1082 = vpack.c.b16 %v750, %v746
    %v1083 = vpack.c.b16 %v755, %v751
    %v1084 = vpack.c.b16 %v756, %v752
    %v1085 = vpack.c.b16 %v757, %v753
    %v1086 = vpack.c.b16 %v758, %v754
    %v1087 = vpack.c.b16 %v763, %v759
    %v1088 = vpack.c.b16 %v764, %v760
    %v1089 = vpack.c.b16 %v765, %v761
    %v1090 = vpack.c.b16 %v766, %v762
    %v1091 = vpack.c.b16 %v771, %v767
    %v1092 = vpack.c.b16 %v772, %v768
    %v1093 = vpack.c.b16 %v773, %v769
    %v1094 = vpack.c.b16 %v774, %v770
    %v1095 = vpack.c.b16 %v779, %v775
    %v1096 = vpack.c.b16 %v780, %v776
    %v1097 = vpack.c.b16 %v781, %v777
    %v1098 = vpack.c.b16 %v782, %v778
    %v1099 = vpack.c.b16 %v787, %v783
    %v1100 = vpack.c.b16 %v788, %v784
    %v1101 = vpack.c.b16 %v789, %v785
    %v1102 = vpack.c.b16 %v790, %v786
    %v1103 = vpack.c.b16 %v795, %v791
    %v1104 = vpack.c.b16 %v796, %v792
    %v1105 = vpack.c.b16 %v797, %v793
    %v1106 = vpack.c.b16 %v798, %v794
    %v1107 = vpack.c.b16 %v803, %v799
    %v1108 = vpack.c.b16 %v804, %v800
    %v1109 = vpack.c.b16 %v805, %v801
    %v1110 = vpack.c.b16 %v806, %v802
    %v1111 = vpack.c.b16 %v811, %v807
    %v1112 = vpack.c.b16 %v812, %v808
    %v1113 = vpack.c.b16 %v813, %v809
    %v1114 = vpack.c.b16 %v814, %v810
    %v1115 = vpack.c.b16 %v819, %v815
    %v1116 = vpack.c.b16 %v820, %v816
    %v1117 = vpack.c.b16 %v821, %v817
    %v1118 = vpack.c.b16 %v822, %v818
    %v1119 = vpack.c.b16 %v827, %v823
    %v1120 = vpack.c.b16 %v828, %v824
    %v1121 = vpack.c.b16 %v829, %v825
    %v1122 = vpack.c.b16 %v830, %v826
    %v1123 = vpack.c.b16 %v835, %v831
    %v1124 = vpack.c.b16 %v836, %v832
    %v1125 = vpack.c.b16 %v837, %v833
    %v1126 = vpack.c.b16 %v838, %v834
    %v1127 = vpack.c.b16 %v843, %v839
    %v1128 = vpack.c.b16 %v844, %v840
    %v1129 = vpack.c.b16 %v845, %v841
    %v1130 = vpack.c.b16 %v846, %v842
    %v1131 = vpack.c.b16 %v851, %v847
    %v1132 = vpack.c.b16 %v852, %v848
    %v1133 = vpack.c.b16 %v853, %v849
    %v1134 = vpack.c.b16 %v854, %v850
    %v1135 = vpack.c.b16 %v859, %v855
    %v1136 = vpack.c.b16 %v860, %v856
    %v1137 = vpack.c.b16 %v861, %v857
    %v1138 = vpack.c.b16 %v862, %v858
    %v1139 = vpack.c.b16 %v867, %v863
    %v1140 = vpack.c.b16 %v868, %v864
    %v1141 = vpack.c.b16 %v869, %v865
    %v1142 = vpack.c.b16 %v870, %v866
    %v1143 = vpack.c.b16 %v875, %v871
    %v1144 = vpack.c.b16 %v876, %v872
    %v1145 = vpack.c.b16 %v877, %v873
    %v1146 = vpack.c.b16 %v878, %v874
    %v1147 = vpack.c.b16 %v883, %v879
    %v1148 = vpack.c.b16 %v884, %v880
    %v1149 = vpack.c.b16 %v885, %v881
    %v1150 = vpack.c.b16 %v886, %v882
    %v1151 = vpack.c.b16 %v891, %v887
    %v1152 = vpack.c.b16 %v892, %v888
    %v1153 = vpack.c.b16 %v893, %v889
    %v1154 = vpack.c.b16 %v894, %v890
    %v1155 = vpack.c.b16 %v899, %v895
    %v1156 = vpack.c.b16 %v900, %v896
    %v1157 = vpack.c.b16 %v901, %v897
    %v1158 = vpack.c.b16 %v902, %v898
    %v1159 = vpack.c.b16 %v907, %v903
    %v1160 = vpack.c.b16 %v908, %v904
    %v1161 = vpack.c.b16 %v909, %v905
    %v1162 = vpack.c.b16 %v910, %v906
    %v1163 = vpack.c.b16 %v915, %v911
    %v1164 = vpack.c.b16 %v916, %v912
    %v1165 = vpack.c.b16 %v917, %v913
    %v1166 = vpack.c.b16 %v918, %v914
    %v1167 = vpack.c.b16 %v923, %v919
    %v1168 = vpack.c.b16 %v924, %v920
    %v1169 = vpack.c.b16 %v925, %v921
    %v1170 = vpack.c.b16 %v926, %v922
    %v1171 = vpack.c.b16 %v931, %v927
    %v1172 = vpack.c.b16 %v932, %v928
    %v1173 = vpack.c.b16 %v933, %v929
    %v1174 = vpack.c.b16 %v934, %v930
    %v1175 = vpack.c.b16 %v939, %v935
    %v1176 = vpack.c.b16 %v940, %v936
    %v1177 = vpack.c.b16 %v941, %v937
    %v1178 = vpack.c.b16 %v942, %v938
    %v1179 = vpack.c.b16 %v947, %v943
    %v1180 = vpack.c.b16 %v948, %v944
    %v1181 = vpack.c.b16 %v949, %v945
    %v1182 = vpack.c.b16 %v950, %v946
    %v1183 = vpack.c.b16 %v955, %v951
    %v1184 = vpack.c.b16 %v956, %v952
    %v1185 = vpack.c.b16 %v957, %v953
    %v1186 = vpack.c.b16 %v958, %v954
    %v1187 = vpack.c.b16 %v963, %v959
    %v1188 = vpack.c.b16 %v964, %v960
    %v1189 = vpack.c.b16 %v965, %v961
    %v1190 = vpack.c.b16 %v966, %v962
    %v1191 = vpack.c.b16 %v971, %v967
    %v1192 = vpack.c.b16 %v972, %v968
    %v1193 = vpack.c.b16 %v973, %v969
    %v1194 = vpack.c.b16 %v974, %v970
    %v1195 = vpack.c.b16 %v979, %v975
    %v1196 = vpack.c.b16 %v980, %v976
    %v1197 = vpack.c.b16 %v981, %v977
    %v1198 = vpack.c.b16 %v982, %v978
    %vm1415 = vcmask 785408
    %v1417 = vsel %vm1415, %v108, 0
    %1419 = vmatpush.bf16.msra.mxu0 %v1011
    %1420 = vmatpush.bf16.msra.mxu0 %v1007
    %1421 = vmatpush.bf16.msra.mxu0 %v1003
    %1422 = vmatpush.bf16.msra.mxu0 %v999
    %1423 = vmatpush.bf16.msra.mxu0 %v995
    %1424 = vmatpush.bf16.msra.mxu0 %v991
    %1425 = vmatpush.bf16.msra.mxu0 %v987
    %1426 = vmatpush.bf16.msra.mxu0 %v983
    %1427 = vmatmul.bf16.gmra.mxu0 %v102
    %v1428 = vpop.f32.mrf.mxu0
    %v1429 = vadd.f32 %v327, %v1428
    %v1430 = vpop.f32.mrf.mxu0
    %1431 = vdwg.mxu0
    %1432 = vmatpush.bf16.msra.mxu0 %v1043
    %1433 = vmatpush.bf16.msra.mxu0 %v1039
    %1434 = vmatpush.bf16.msra.mxu0 %v1035
    %1435 = vmatpush.bf16.msra.mxu0 %v1031
    %1436 = vmatpush.bf16.msra.mxu0 %v1027
    %1437 = vmatpush.bf16.msra.mxu0 %v1023
    %1438 = vmatpush.bf16.msra.mxu0 %v1019
    %1439 = vmatpush.bf16.msra.mxu0 %v1015
    %1440 = vmatmul.bf16.gmra.mxu0 %v103
    %v1441 = vpop.f32.mrf.mxu0
    %v1442 = vadd.f32 %v1429, %v1441
    %v1443 = vpop.f32.mrf.mxu0
    %1444 = vdwg.mxu0
    %1445 = vmatpush.bf16.msra.mxu0 %v1075
    %1446 = vmatpush.bf16.msra.mxu0 %v1071
    %1447 = vmatpush.bf16.msra.mxu0 %v1067
    %1448 = vmatpush.bf16.msra.mxu0 %v1063
    %1449 = vmatpush.bf16.msra.mxu0 %v1059
    %1450 = vmatpush.bf16.msra.mxu0 %v1055
    %1451 = vmatpush.bf16.msra.mxu0 %v1051
    %1452 = vmatpush.bf16.msra.mxu0 %v1047
    %1453 = vmatmul.bf16.gmra.mxu0 %v104
    %v1454 = vpop.f32.mrf.mxu0
    %v1455 = vadd.f32 %v1442, %v1454
    %v1456 = vpop.f32.mrf.mxu0
    %1457 = vdwg.mxu0
    %1458 = vmatpush.bf16.msra.mxu0 %v1107
    %1459 = vmatpush.bf16.msra.mxu0 %v1103
    %1460 = vmatpush.bf16.msra.mxu0 %v1099
    %1461 = vmatpush.bf16.msra.mxu0 %v1095
    %1462 = vmatpush.bf16.msra.mxu0 %v1091
    %1463 = vmatpush.bf16.msra.mxu0 %v1087
    %1464 = vmatpush.bf16.msra.mxu0 %v1083
    %1465 = vmatpush.bf16.msra.mxu0 %v1079
    %1466 = vmatmul.bf16.gmra.mxu0 %v105
    %v1467 = vpop.f32.mrf.mxu0
    %v1468 = vadd.f32 %v1455, %v1467
    %v1469 = vpop.f32.mrf.mxu0
    %1470 = vdwg.mxu0
    %1471 = vmatpush.bf16.msra.mxu0 %v1139
    %1472 = vmatpush.bf16.msra.mxu0 %v1135
    %1473 = vmatpush.bf16.msra.mxu0 %v1131
    %1474 = vmatpush.bf16.msra.mxu0 %v1127
    %1475 = vmatpush.bf16.msra.mxu0 %v1123
    %1476 = vmatpush.bf16.msra.mxu0 %v1119
    %1477 = vmatpush.bf16.msra.mxu0 %v1115
    %1478 = vmatpush.bf16.msra.mxu0 %v1111
    %1479 = vmatmul.bf16.gmra.mxu0 %v106
    %v1480 = vpop.f32.mrf.mxu0
    %v1481 = vadd.f32 %v1468, %v1480
    %v1482 = vpop.f32.mrf.mxu0
    %1483 = vdwg.mxu0
    %1484 = vmatpush.bf16.msra.mxu0 %v1171
    %1485 = vmatpush.bf16.msra.mxu0 %v1167
    %1486 = vmatpush.bf16.msra.mxu0 %v1163
    %1487 = vmatpush.bf16.msra.mxu0 %v1159
    %1488 = vmatpush.bf16.msra.mxu0 %v1155
    %1489 = vmatpush.bf16.msra.mxu0 %v1151
    %1490 = vmatpush.bf16.msra.mxu0 %v1147
    %1491 = vmatpush.bf16.msra.mxu0 %v1143
    %1492 = vmatmul.bf16.gmra.mxu0 %v107
    %v1493 = vpop.f32.mrf.mxu0
    %v1494 = vadd.f32 %v1481, %v1493
    %v1495 = vpop.f32.mrf.mxu0
    %1496 = vdwg.mxu0
    %1497 = vmatpush.bf16.msra.mxu0 0
    %1498 = vmatpush.bf16.msra.mxu0 0
    %1499 = vmatpush.bf16.msra.mxu0 %v1195
    %1500 = vmatpush.bf16.msra.mxu0 %v1191
    %1501 = vmatpush.bf16.msra.mxu0 %v1187
    %1502 = vmatpush.bf16.msra.mxu0 %v1183
    %1503 = vmatpush.bf16.msra.mxu0 %v1179
    %1504 = vmatpush.bf16.msra.mxu0 %v1175
    %1505 = vmatmul.bf16.gmra.mxu0 %v1417
    %v1506 = vpop.f32.mrf.mxu0
    %v1507 = vadd.f32 %v1494, %v1506
    %v1508 = vpop.f32.mrf.mxu0
    %1509 = vdwg.mxu0
    %1510 = vmatpush.bf16.msra.mxu0 %v1012
    %1511 = vmatpush.bf16.msra.mxu0 %v1008
    %1512 = vmatpush.bf16.msra.mxu0 %v1004
    %1513 = vmatpush.bf16.msra.mxu0 %v1000
    %1514 = vmatpush.bf16.msra.mxu0 %v996
    %1515 = vmatpush.bf16.msra.mxu0 %v992
    %1516 = vmatpush.bf16.msra.mxu0 %v988
    %1517 = vmatpush.bf16.msra.mxu0 %v984
    %1518 = vmatmul.bf16.gmra.mxu0 %v102
    %v1519 = vpop.f32.mrf.mxu0
    %v1520 = vadd.f32 %v328, %v1519
    %v1521 = vpop.f32.mrf.mxu0
    %1522 = vdwg.mxu0
    %1523 = vmatpush.bf16.msra.mxu0 %v1044
    %1524 = vmatpush.bf16.msra.mxu0 %v1040
    %1525 = vmatpush.bf16.msra.mxu0 %v1036
    %1526 = vmatpush.bf16.msra.mxu0 %v1032
    %1527 = vmatpush.bf16.msra.mxu0 %v1028
    %1528 = vmatpush.bf16.msra.mxu0 %v1024
    %1529 = vmatpush.bf16.msra.mxu0 %v1020
    %1530 = vmatpush.bf16.msra.mxu0 %v1016
    %1531 = vmatmul.bf16.gmra.mxu0 %v103
    %v1532 = vpop.f32.mrf.mxu0
    %v1533 = vadd.f32 %v1520, %v1532
    %v1534 = vpop.f32.mrf.mxu0
    %1535 = vdwg.mxu0
    %1536 = vmatpush.bf16.msra.mxu0 %v1076
    %1537 = vmatpush.bf16.msra.mxu0 %v1072
    %1538 = vmatpush.bf16.msra.mxu0 %v1068
    %1539 = vmatpush.bf16.msra.mxu0 %v1064
    %1540 = vmatpush.bf16.msra.mxu0 %v1060
    %1541 = vmatpush.bf16.msra.mxu0 %v1056
    %1542 = vmatpush.bf16.msra.mxu0 %v1052
    %1543 = vmatpush.bf16.msra.mxu0 %v1048
    %1544 = vmatmul.bf16.gmra.mxu0 %v104
    %v1545 = vpop.f32.mrf.mxu0
    %v1546 = vadd.f32 %v1533, %v1545
    %v1547 = vpop.f32.mrf.mxu0
    %1548 = vdwg.mxu0
    %1549 = vmatpush.bf16.msra.mxu0 %v1108
    %1550 = vmatpush.bf16.msra.mxu0 %v1104
    %1551 = vmatpush.bf16.msra.mxu0 %v1100
    %1552 = vmatpush.bf16.msra.mxu0 %v1096
    %1553 = vmatpush.bf16.msra.mxu0 %v1092
    %1554 = vmatpush.bf16.msra.mxu0 %v1088
    %1555 = vmatpush.bf16.msra.mxu0 %v1084
    %1556 = vmatpush.bf16.msra.mxu0 %v1080
    %1557 = vmatmul.bf16.gmra.mxu0 %v105
    %v1558 = vpop.f32.mrf.mxu0
    %v1559 = vadd.f32 %v1546, %v1558
    %v1560 = vpop.f32.mrf.mxu0
    %1561 = vdwg.mxu0
    %1562 = vmatpush.bf16.msra.mxu0 %v1140
    %1563 = vmatpush.bf16.msra.mxu0 %v1136
    %1564 = vmatpush.bf16.msra.mxu0 %v1132
    %1565 = vmatpush.bf16.msra.mxu0 %v1128
    %1566 = vmatpush.bf16.msra.mxu0 %v1124
    %1567 = vmatpush.bf16.msra.mxu0 %v1120
    %1568 = vmatpush.bf16.msra.mxu0 %v1116
    %1569 = vmatpush.bf16.msra.mxu0 %v1112
    %1570 = vmatmul.bf16.gmra.mxu0 %v106
    %v1571 = vpop.f32.mrf.mxu0
    %v1572 = vadd.f32 %v1559, %v1571
    %v1573 = vpop.f32.mrf.mxu0
    %1574 = vdwg.mxu0
    %1575 = vmatpush.bf16.msra.mxu0 %v1172
    %1576 = vmatpush.bf16.msra.mxu0 %v1168
    %1577 = vmatpush.bf16.msra.mxu0 %v1164
    %1578 = vmatpush.bf16.msra.mxu0 %v1160
    %1579 = vmatpush.bf16.msra.mxu0 %v1156
    %1580 = vmatpush.bf16.msra.mxu0 %v1152
    %1581 = vmatpush.bf16.msra.mxu0 %v1148
    %1582 = vmatpush.bf16.msra.mxu0 %v1144
    %1583 = vmatmul.bf16.gmra.mxu0 %v107
    %v1584 = vpop.f32.mrf.mxu0
    %v1585 = vadd.f32 %v1572, %v1584
    %v1586 = vpop.f32.mrf.mxu0
    %1587 = vdwg.mxu0
    %1588 = vmatpush.bf16.msra.mxu0 0
    %1589 = vmatpush.bf16.msra.mxu0 0
    %1590 = vmatpush.bf16.msra.mxu0 %v1196
    %1591 = vmatpush.bf16.msra.mxu0 %v1192
    %1592 = vmatpush.bf16.msra.mxu0 %v1188
    %1593 = vmatpush.bf16.msra.mxu0 %v1184
    %1594 = vmatpush.bf16.msra.mxu0 %v1180
    %1595 = vmatpush.bf16.msra.mxu0 %v1176
    %1596 = vmatmul.bf16.gmra.mxu0 %v1417
    %v1597 = vpop.f32.mrf.mxu0
    %v1598 = vadd.f32 %v1585, %v1597
    %v1599 = vpop.f32.mrf.mxu0
    %1600 = vdwg.mxu0
    %1601 = vmatpush.bf16.msra.mxu0 %v1013
    %1602 = vmatpush.bf16.msra.mxu0 %v1009
    %1603 = vmatpush.bf16.msra.mxu0 %v1005
    %1604 = vmatpush.bf16.msra.mxu0 %v1001
    %1605 = vmatpush.bf16.msra.mxu0 %v997
    %1606 = vmatpush.bf16.msra.mxu0 %v993
    %1607 = vmatpush.bf16.msra.mxu0 %v989
    %1608 = vmatpush.bf16.msra.mxu0 %v985
    %1609 = vmatmul.bf16.gmra.mxu0 %v102
    %v1610 = vpop.f32.mrf.mxu0
    %v1611 = vadd.f32 %v329, %v1610
    %v1612 = vpop.f32.mrf.mxu0
    %1613 = vdwg.mxu0
    %1614 = vmatpush.bf16.msra.mxu0 %v1045
    %1615 = vmatpush.bf16.msra.mxu0 %v1041
    %1616 = vmatpush.bf16.msra.mxu0 %v1037
    %1617 = vmatpush.bf16.msra.mxu0 %v1033
    %1618 = vmatpush.bf16.msra.mxu0 %v1029
    %1619 = vmatpush.bf16.msra.mxu0 %v1025
    %1620 = vmatpush.bf16.msra.mxu0 %v1021
    %1621 = vmatpush.bf16.msra.mxu0 %v1017
    %1622 = vmatmul.bf16.gmra.mxu0 %v103
    %v1623 = vpop.f32.mrf.mxu0
    %v1624 = vadd.f32 %v1611, %v1623
    %v1625 = vpop.f32.mrf.mxu0
    %1626 = vdwg.mxu0
    %1627 = vmatpush.bf16.msra.mxu0 %v1077
    %1628 = vmatpush.bf16.msra.mxu0 %v1073
    %1629 = vmatpush.bf16.msra.mxu0 %v1069
    %1630 = vmatpush.bf16.msra.mxu0 %v1065
    %1631 = vmatpush.bf16.msra.mxu0 %v1061
    %1632 = vmatpush.bf16.msra.mxu0 %v1057
    %1633 = vmatpush.bf16.msra.mxu0 %v1053
    %1634 = vmatpush.bf16.msra.mxu0 %v1049
    %1635 = vmatmul.bf16.gmra.mxu0 %v104
    %v1636 = vpop.f32.mrf.mxu0
    %v1637 = vadd.f32 %v1624, %v1636
    %v1638 = vpop.f32.mrf.mxu0
    %1639 = vdwg.mxu0
    %1640 = vmatpush.bf16.msra.mxu0 %v1109
    %1641 = vmatpush.bf16.msra.mxu0 %v1105
    %1642 = vmatpush.bf16.msra.mxu0 %v1101
    %1643 = vmatpush.bf16.msra.mxu0 %v1097
    %1644 = vmatpush.bf16.msra.mxu0 %v1093
    %1645 = vmatpush.bf16.msra.mxu0 %v1089
    %1646 = vmatpush.bf16.msra.mxu0 %v1085
    %1647 = vmatpush.bf16.msra.mxu0 %v1081
    %1648 = vmatmul.bf16.gmra.mxu0 %v105
    %v1649 = vpop.f32.mrf.mxu0
    %v1650 = vadd.f32 %v1637, %v1649
    %v1651 = vpop.f32.mrf.mxu0
    %1652 = vdwg.mxu0
    %1653 = vmatpush.bf16.msra.mxu0 %v1141
    %1654 = vmatpush.bf16.msra.mxu0 %v1137
    %1655 = vmatpush.bf16.msra.mxu0 %v1133
    %1656 = vmatpush.bf16.msra.mxu0 %v1129
    %1657 = vmatpush.bf16.msra.mxu0 %v1125
    %1658 = vmatpush.bf16.msra.mxu0 %v1121
    %1659 = vmatpush.bf16.msra.mxu0 %v1117
    %1660 = vmatpush.bf16.msra.mxu0 %v1113
    %1661 = vmatmul.bf16.gmra.mxu0 %v106
    %v1662 = vpop.f32.mrf.mxu0
    %v1663 = vadd.f32 %v1650, %v1662
    %v1664 = vpop.f32.mrf.mxu0
    %1665 = vdwg.mxu0
    %1666 = vmatpush.bf16.msra.mxu0 %v1173
    %1667 = vmatpush.bf16.msra.mxu0 %v1169
    %1668 = vmatpush.bf16.msra.mxu0 %v1165
    %1669 = vmatpush.bf16.msra.mxu0 %v1161
    %1670 = vmatpush.bf16.msra.mxu0 %v1157
    %1671 = vmatpush.bf16.msra.mxu0 %v1153
    %1672 = vmatpush.bf16.msra.mxu0 %v1149
    %1673 = vmatpush.bf16.msra.mxu0 %v1145
    %1674 = vmatmul.bf16.gmra.mxu0 %v107
    %v1675 = vpop.f32.mrf.mxu0
    %v1676 = vadd.f32 %v1663, %v1675
    %v1677 = vpop.f32.mrf.mxu0
    %1678 = vdwg.mxu0
    %1679 = vmatpush.bf16.msra.mxu0 0
    %1680 = vmatpush.bf16.msra.mxu0 0
    %1681 = vmatpush.bf16.msra.mxu0 %v1197
    %1682 = vmatpush.bf16.msra.mxu0 %v1193
    %1683 = vmatpush.bf16.msra.mxu0 %v1189
    %1684 = vmatpush.bf16.msra.mxu0 %v1185
    %1685 = vmatpush.bf16.msra.mxu0 %v1181
    %1686 = vmatpush.bf16.msra.mxu0 %v1177
    %1687 = vmatmul.bf16.gmra.mxu0 %v1417
    %v1688 = vpop.f32.mrf.mxu0
    %v1689 = vadd.f32 %v1676, %v1688
    %v1690 = vpop.f32.mrf.mxu0
    %1691 = vdwg.mxu0
    %1692 = vmatpush.bf16.msra.mxu0 %v1014
    %1693 = vmatpush.bf16.msra.mxu0 %v1010
    %1694 = vmatpush.bf16.msra.mxu0 %v1006
    %1695 = vmatpush.bf16.msra.mxu0 %v1002
    %1696 = vmatpush.bf16.msra.mxu0 %v998
    %1697 = vmatpush.bf16.msra.mxu0 %v994
    %1698 = vmatpush.bf16.msra.mxu0 %v990
    %1699 = vmatpush.bf16.msra.mxu0 %v986
    %1700 = vmatmul.bf16.gmra.mxu0 %v102
    %v1701 = vpop.f32.mrf.mxu0
    %v1702 = vadd.f32 %v330, %v1701
    %v1703 = vpop.f32.mrf.mxu0
    %1704 = vdwg.mxu0
    %1705 = vmatpush.bf16.msra.mxu0 %v1046
    %1706 = vmatpush.bf16.msra.mxu0 %v1042
    %1707 = vmatpush.bf16.msra.mxu0 %v1038
    %1708 = vmatpush.bf16.msra.mxu0 %v1034
    %1709 = vmatpush.bf16.msra.mxu0 %v1030
    %1710 = vmatpush.bf16.msra.mxu0 %v1026
    %1711 = vmatpush.bf16.msra.mxu0 %v1022
    %1712 = vmatpush.bf16.msra.mxu0 %v1018
    %1713 = vmatmul.bf16.gmra.mxu0 %v103
    %v1714 = vpop.f32.mrf.mxu0
    %v1715 = vadd.f32 %v1702, %v1714
    %v1716 = vpop.f32.mrf.mxu0
    %1717 = vdwg.mxu0
    %1718 = vmatpush.bf16.msra.mxu0 %v1078
    %1719 = vmatpush.bf16.msra.mxu0 %v1074
    %1720 = vmatpush.bf16.msra.mxu0 %v1070
    %1721 = vmatpush.bf16.msra.mxu0 %v1066
    %1722 = vmatpush.bf16.msra.mxu0 %v1062
    %1723 = vmatpush.bf16.msra.mxu0 %v1058
    %1724 = vmatpush.bf16.msra.mxu0 %v1054
    %1725 = vmatpush.bf16.msra.mxu0 %v1050
    %1726 = vmatmul.bf16.gmra.mxu0 %v104
    %v1727 = vpop.f32.mrf.mxu0
    %v1728 = vadd.f32 %v1715, %v1727
    %v1729 = vpop.f32.mrf.mxu0
    %1730 = vdwg.mxu0
    %1731 = vmatpush.bf16.msra.mxu0 %v1110
    %1732 = vmatpush.bf16.msra.mxu0 %v1106
    %1733 = vmatpush.bf16.msra.mxu0 %v1102
    %1734 = vmatpush.bf16.msra.mxu0 %v1098
    %1735 = vmatpush.bf16.msra.mxu0 %v1094
    %1736 = vmatpush.bf16.msra.mxu0 %v1090
    %1737 = vmatpush.bf16.msra.mxu0 %v1086
    %1738 = vmatpush.bf16.msra.mxu0 %v1082
    %1739 = vmatmul.bf16.gmra.mxu0 %v105
    %v1740 = vpop.f32.mrf.mxu0
    %v1741 = vadd.f32 %v1728, %v1740
    %v1742 = vpop.f32.mrf.mxu0
    %1743 = vdwg.mxu0
    %1744 = vmatpush.bf16.msra.mxu0 %v1142
    %1745 = vmatpush.bf16.msra.mxu0 %v1138
    %1746 = vmatpush.bf16.msra.mxu0 %v1134
    %1747 = vmatpush.bf16.msra.mxu0 %v1130
    %1748 = vmatpush.bf16.msra.mxu0 %v1126
    %1749 = vmatpush.bf16.msra.mxu0 %v1122
    %1750 = vmatpush.bf16.msra.mxu0 %v1118
    %1751 = vmatpush.bf16.msra.mxu0 %v1114
    %1752 = vmatmul.bf16.gmra.mxu0 %v106
    %v1753 = vpop.f32.mrf.mxu0
    %v1754 = vadd.f32 %v1741, %v1753
    %v1755 = vpop.f32.mrf.mxu0
    %1756 = vdwg.mxu0
    %1757 = vmatpush.bf16.msra.mxu0 %v1174
    %1758 = vmatpush.bf16.msra.mxu0 %v1170
    %1759 = vmatpush.bf16.msra.mxu0 %v1166
    %1760 = vmatpush.bf16.msra.mxu0 %v1162
    %1761 = vmatpush.bf16.msra.mxu0 %v1158
    %1762 = vmatpush.bf16.msra.mxu0 %v1154
    %1763 = vmatpush.bf16.msra.mxu0 %v1150
    %1764 = vmatpush.bf16.msra.mxu0 %v1146
    %1765 = vmatmul.bf16.gmra.mxu0 %v107
    %v1766 = vpop.f32.mrf.mxu0
    %v1767 = vadd.f32 %v1754, %v1766
    %v1768 = vpop.f32.mrf.mxu0
    %1769 = vdwg.mxu0
    %1770 = vmatpush.bf16.msra.mxu0 0
    %1771 = vmatpush.bf16.msra.mxu0 0
    %1772 = vmatpush.bf16.msra.mxu0 %v1198
    %1773 = vmatpush.bf16.msra.mxu0 %v1194
    %1774 = vmatpush.bf16.msra.mxu0 %v1190
    %1775 = vmatpush.bf16.msra.mxu0 %v1186
    %1776 = vmatpush.bf16.msra.mxu0 %v1182
    %1777 = vmatpush.bf16.msra.mxu0 %v1178
    %1778 = vmatmul.bf16.gmra.mxu0 %v1417
    %v1779 = vpop.f32.mrf.mxu0
    %v1780 = vadd.f32 %v1767, %v1779
    %v1781 = vpop.f32.mrf.mxu0
    %1782 = vdwg.mxu0
    %v1783 = vmul.f32 %v1507, 0.01
    %v1784 = vmul.f32 %v1598, 0.01
    %v1785 = vmul.f32 %v1689, 0.01
    %v1786 = vmul.f32 %v1780, 0.01
    %v1787 = vmax.f32 %v1507, %v1783
    %v1788 = vmax.f32 %v1598, %v1784
    %v1789 = vmax.f32 %v1689, %v1785
    %v1790 = vmax.f32 %v1780, %v1786
    %v1791 = vpack.c.bf16 %v1787, %v1787
    %v1792 = vpack.c.bf16 %v1788, %v1788
    %v1793 = vpack.c.bf16 %v1789, %v1789
    %v1794 = vpack.c.bf16 %v1790, %v1790
    %v1795 = vld [vmem:[#allocation8] sm:$0xf]
    %v1796 = vld [vmem:[#allocation8 + $0x4] sm:$0xf]
    %v1797 = vld [vmem:[#allocation8 + $0x8] sm:$0xf]
    %v1798 = vld [vmem:[#allocation8 + $0xc] sm:$0xf]
    %v1799 = vld [vmem:[#allocation8 + $0x10] sm:$0xf]
    %v1800 = vld [vmem:[#allocation8 + $0x14] sm:$0xf]
    %v1801 = vld [vmem:[#allocation8 + $0x18] sm:$0xf]
    %v1802 = vld [vmem:[#allocation8 + $0x1c] sm:$0xf]
    %v1803 = vld [vmem:[#allocation8 + $0x20] sm:$0xf]
    %v1804 = vld [vmem:[#allocation8 + $0x24] sm:$0xf]
    %v1805 = vld [vmem:[#allocation8 + $0x28] sm:$0xf]
    %v1806 = vld [vmem:[#allocation8 + $0x2c] sm:$0xf]
    %v1807 = vld [vmem:[#allocation8 + $0x30] sm:$0xf]
    %v1808 = vld [vmem:[#allocation8 + $0x34] sm:$0xf]
    %v1809 = vld [vmem:[#allocation8 + $0x38] sm:$0xf]
    %v1810 = vld [vmem:[#allocation8 + $0x3c] sm:$0xf]
    %v1811 = vld [vmem:[#allocation8 + $0x40] sm:$0xf]
    %v1812 = vld [vmem:[#allocation8 + $0x44] sm:$0xf]
    %v1813 = vld [vmem:[#allocation8 + $0x48] sm:$0xf]
    %v1814 = vld [vmem:[#allocation8 + $0x4c] sm:$0xf]
    %v1815 = vld [vmem:[#allocation8 + $0x50] sm:$0xf]
    %v1816 = vld [vmem:[#allocation8 + $0x54] sm:$0xf]
    %v1817 = vld [vmem:[#allocation8 + $0x58] sm:$0xf]
    %v1818 = vld [vmem:[#allocation8 + $0x5c] sm:$0xf]
    %v1819 = vld [vmem:[#allocation8 + $0x60] sm:$0xf]
    %v1820 = vld [vmem:[#allocation8 + $0x64] sm:$0xf]
    %v1821 = vld [vmem:[#allocation8 + $0x68] sm:$0xf]
    %v1822 = vld [vmem:[#allocation8 + $0x6c] sm:$0xf]
    %v1823 = vld [vmem:[#allocation8 + $0x70] sm:$0xf]
    %v1824 = vld [vmem:[#allocation8 + $0x74] sm:$0xf]
    %v1825 = vld [vmem:[#allocation8 + $0x78] sm:$0xf]
    %v1826 = vld [vmem:[#allocation8 + $0x7c] sm:$0xf]
    %v1827 = vld [vmem:[#allocation8 + $0x80] sm:$0xf]
    %v1828 = vld [vmem:[#allocation8 + $0x84] sm:$0xf]
    %v1829 = vld [vmem:[#allocation8 + $0x88] sm:$0xf]
    %v1830 = vld [vmem:[#allocation8 + $0x8c] sm:$0xf]
    %v1831 = vld [vmem:[#allocation8 + $0x90] sm:$0xf]
    %v1832 = vld [vmem:[#allocation8 + $0x94] sm:$0xf]
    %v1833 = vld [vmem:[#allocation8 + $0x98] sm:$0xf]
    %v1834 = vld [vmem:[#allocation8 + $0x9c] sm:$0xf]
    %v1835 = vld [vmem:[#allocation8 + $0xa0] sm:$0xf]
    %v1836 = vld [vmem:[#allocation8 + $0xa4] sm:$0xf]
    %v1837 = vld [vmem:[#allocation8 + $0xa8] sm:$0xf]
    %v1838 = vld [vmem:[#allocation8 + $0xac] sm:$0xf]
    %v1839 = vld [vmem:[#allocation8 + $0xb0] sm:$0xf]
    %v1840 = vld [vmem:[#allocation8 + $0xb4] sm:$0xf]
    %v1841 = vld [vmem:[#allocation8 + $0xb8] sm:$0xf]
    %v1842 = vld [vmem:[#allocation8 + $0xbc] sm:$0xf]
    %v1843 = vld [vmem:[#allocation8 + $0xc0] sm:$0xf]
    %v1844 = vld [vmem:[#allocation8 + $0xc4] sm:$0xf]
    %v1845 = vld [vmem:[#allocation8 + $0xc8] sm:$0xf]
    %v1846 = vld [vmem:[#allocation8 + $0xcc] sm:$0xf]
    %v1847 = vld [vmem:[#allocation8 + $0xd0] sm:$0xf]
    %v1848 = vld [vmem:[#allocation8 + $0xd4] sm:$0xf]
    %v1849 = vld [vmem:[#allocation8 + $0xd8] sm:$0xf]
    %v1850 = vld [vmem:[#allocation8 + $0xdc] sm:$0xf]
    %v1851 = vld [vmem:[#allocation8 + $0xe0] sm:$0xf]
    %v1852 = vld [vmem:[#allocation8 + $0xe4] sm:$0xf]
    %v1853 = vld [vmem:[#allocation8 + $0xe8] sm:$0xf]
    %v1854 = vld [vmem:[#allocation8 + $0xec] sm:$0xf]
    %v1855 = vld [vmem:[#allocation8 + $0xf0] sm:$0xf]
    %v1856 = vld [vmem:[#allocation8 + $0xf4] sm:$0xf]
    %v1857 = vld [vmem:[#allocation8 + $0xf8] sm:$0xf]
    %v1858 = vld [vmem:[#allocation8 + $0xfc] sm:$0xf]
    %v1859 = vld [vmem:[%s4] sm:$0x1]
    %v1861 = vperm.slane %v1859, 0
    %v1927 = vunpack.c.l.b16 %v1795
    %v1928 = vunpack.c.l.b16 %v1796
    %v1929 = vunpack.c.l.b16 %v1797
    %v1930 = vunpack.c.l.b16 %v1798
    %v1931 = vunpack.c.l.b16 %v1799
    %v1932 = vunpack.c.l.b16 %v1800
    %v1933 = vunpack.c.l.b16 %v1801
    %v1934 = vunpack.c.l.b16 %v1802
    %v1935 = vunpack.c.l.b16 %v1803
    %v1936 = vunpack.c.l.b16 %v1804
    %v1937 = vunpack.c.l.b16 %v1805
    %v1938 = vunpack.c.l.b16 %v1806
    %v1939 = vunpack.c.l.b16 %v1807
    %v1940 = vunpack.c.l.b16 %v1808
    %v1941 = vunpack.c.l.b16 %v1809
    %v1942 = vunpack.c.l.b16 %v1810
    %v1943 = vunpack.c.l.b16 %v1811
    %v1944 = vunpack.c.l.b16 %v1812
    %v1945 = vunpack.c.l.b16 %v1813
    %v1946 = vunpack.c.l.b16 %v1814
    %v1947 = vunpack.c.l.b16 %v1815
    %v1948 = vunpack.c.l.b16 %v1816
    %v1949 = vunpack.c.l.b16 %v1817
    %v1950 = vunpack.c.l.b16 %v1818
    %v1951 = vunpack.c.l.b16 %v1819
    %v1952 = vunpack.c.l.b16 %v1820
    %v1953 = vunpack.c.l.b16 %v1821
    %v1954 = vunpack.c.l.b16 %v1822
    %v1955 = vunpack.c.l.b16 %v1823
    %v1956 = vunpack.c.l.b16 %v1824
    %v1957 = vunpack.c.l.b16 %v1825
    %v1958 = vunpack.c.l.b16 %v1826
    %v1959 = vunpack.c.l.b16 %v1827
    %v1960 = vunpack.c.l.b16 %v1828
    %v1961 = vunpack.c.l.b16 %v1829
    %v1962 = vunpack.c.l.b16 %v1830
    %v1963 = vunpack.c.l.b16 %v1831
    %v1964 = vunpack.c.l.b16 %v1832
    %v1965 = vunpack.c.l.b16 %v1833
    %v1966 = vunpack.c.l.b16 %v1834
    %v1967 = vunpack.c.l.b16 %v1835
    %v1968 = vunpack.c.l.b16 %v1836
    %v1969 = vunpack.c.l.b16 %v1837
    %v1970 = vunpack.c.l.b16 %v1838
    %v1971 = vunpack.c.l.b16 %v1839
    %v1972 = vunpack.c.l.b16 %v1840
    %v1973 = vunpack.c.l.b16 %v1841
    %v1974 = vunpack.c.l.b16 %v1842
    %v1975 = vunpack.c.l.b16 %v1843
    %v1976 = vunpack.c.l.b16 %v1844
    %v1977 = vunpack.c.l.b16 %v1845
    %v1978 = vunpack.c.l.b16 %v1846
    %v1979 = vunpack.c.l.b16 %v1847
    %v1980 = vunpack.c.l.b16 %v1848
    %v1981 = vunpack.c.l.b16 %v1849
    %v1982 = vunpack.c.l.b16 %v1850
    %v1983 = vunpack.c.l.b16 %v1851
    %v1984 = vunpack.c.l.b16 %v1852
    %v1985 = vunpack.c.l.b16 %v1853
    %v1986 = vunpack.c.l.b16 %v1854
    %v1987 = vunpack.c.l.b16 %v1855
    %v1988 = vunpack.c.l.b16 %v1856
    %v1989 = vunpack.c.l.b16 %v1857
    %v1990 = vunpack.c.l.b16 %v1858
    %v1991 = vpack.c.b16 %v1928, %v1927
    %v1992 = vpack.c.b16 %v1930, %v1929
    %v1993 = vpack.c.b16 %v1932, %v1931
    %v1994 = vpack.c.b16 %v1934, %v1933
    %v1995 = vpack.c.b16 %v1936, %v1935
    %v1996 = vpack.c.b16 %v1938, %v1937
    %v1997 = vpack.c.b16 %v1940, %v1939
    %v1998 = vpack.c.b16 %v1942, %v1941
    %v1999 = vpack.c.b16 %v1944, %v1943
    %v2000 = vpack.c.b16 %v1946, %v1945
    %v2001 = vpack.c.b16 %v1948, %v1947
    %v2002 = vpack.c.b16 %v1950, %v1949
    %v2003 = vpack.c.b16 %v1952, %v1951
    %v2004 = vpack.c.b16 %v1954, %v1953
    %v2005 = vpack.c.b16 %v1956, %v1955
    %v2006 = vpack.c.b16 %v1958, %v1957
    %v2007 = vpack.c.b16 %v1960, %v1959
    %v2008 = vpack.c.b16 %v1962, %v1961
    %v2009 = vpack.c.b16 %v1964, %v1963
    %v2010 = vpack.c.b16 %v1966, %v1965
    %v2011 = vpack.c.b16 %v1968, %v1967
    %v2012 = vpack.c.b16 %v1970, %v1969
    %v2013 = vpack.c.b16 %v1972, %v1971
    %v2014 = vpack.c.b16 %v1974, %v1973
    %v2015 = vpack.c.b16 %v1976, %v1975
    %v2016 = vpack.c.b16 %v1978, %v1977
    %v2017 = vpack.c.b16 %v1980, %v1979
    %v2018 = vpack.c.b16 %v1982, %v1981
    %v2019 = vpack.c.b16 %v1984, %v1983
    %v2020 = vpack.c.b16 %v1986, %v1985
    %v2021 = vpack.c.b16 %v1988, %v1987
    %v2022 = vpack.c.b16 %v1990, %v1989
    %2055 = vmatpush.bf16.msra.mxu0 %v1998
    %2056 = vmatpush.bf16.msra.mxu0 %v1997
    %2057 = vmatpush.bf16.msra.mxu0 %v1996
    %2058 = vmatpush.bf16.msra.mxu0 %v1995
    %2059 = vmatpush.bf16.msra.mxu0 %v1994
    %2060 = vmatpush.bf16.msra.mxu0 %v1993
    %2061 = vmatpush.bf16.msra.mxu0 %v1992
    %2062 = vmatpush.bf16.msra.mxu0 %v1991
    %2063 = vmatmul.bf16.gmra.mxu0 %v1791
    %v2064 = vpop.f32.mrf.mxu0
    %v2065 = vadd.f32 %v1861, %v2064
    %v2066 = vpop.f32.mrf.mxu0
    %2067 = vdwg.mxu0
    %2068 = vmatpush.bf16.msra.mxu0 %v2006
    %2069 = vmatpush.bf16.msra.mxu0 %v2005
    %2070 = vmatpush.bf16.msra.mxu0 %v2004
    %2071 = vmatpush.bf16.msra.mxu0 %v2003
    %2072 = vmatpush.bf16.msra.mxu0 %v2002
    %2073 = vmatpush.bf16.msra.mxu0 %v2001
    %2074 = vmatpush.bf16.msra.mxu0 %v2000
    %2075 = vmatpush.bf16.msra.mxu0 %v1999
    %2076 = vmatmul.bf16.gmra.mxu0 %v1792
    %v2077 = vpop.f32.mrf.mxu0
    %v2078 = vadd.f32 %v2065, %v2077
    %v2079 = vpop.f32.mrf.mxu0
    %2080 = vdwg.mxu0
    %2081 = vmatpush.bf16.msra.mxu0 %v2014
    %2082 = vmatpush.bf16.msra.mxu0 %v2013
    %2083 = vmatpush.bf16.msra.mxu0 %v2012
    %2084 = vmatpush.bf16.msra.mxu0 %v2011
    %2085 = vmatpush.bf16.msra.mxu0 %v2010
    %2086 = vmatpush.bf16.msra.mxu0 %v2009
    %2087 = vmatpush.bf16.msra.mxu0 %v2008
    %2088 = vmatpush.bf16.msra.mxu0 %v2007
    %2089 = vmatmul.bf16.gmra.mxu0 %v1793
    %v2090 = vpop.f32.mrf.mxu0
    %v2091 = vadd.f32 %v2078, %v2090
    %v2092 = vpop.f32.mrf.mxu0
    %2093 = vdwg.mxu0
    %2094 = vmatpush.bf16.msra.mxu0 %v2022
    %2095 = vmatpush.bf16.msra.mxu0 %v2021
    %2096 = vmatpush.bf16.msra.mxu0 %v2020
    %2097 = vmatpush.bf16.msra.mxu0 %v2019
    %2098 = vmatpush.bf16.msra.mxu0 %v2018
    %2099 = vmatpush.bf16.msra.mxu0 %v2017
    %2100 = vmatpush.bf16.msra.mxu0 %v2016
    %2101 = vmatpush.bf16.msra.mxu0 %v2015
    %2102 = vmatmul.bf16.gmra.mxu0 %v1794
    %v2103 = vpop.f32.mrf.mxu0
    %v2104 = vadd.f32 %v2091, %v2103
    %v2105 = vpop.f32.mrf.mxu0
    %2106 = vdwg.mxu0
    %2107 = vst [vmem:[#allocation10] sm:$0x3] %v2104
    // Predicated region
    $region38: #{tpu_custom_call.1} parent=1 // pred_check
      _
    $region39: #{tpu_custom_call.1} parent=1 // pred_check_branch
      %2109 = sbr.rel (0) target = $region41
    $region40: #{tpu_custom_call.1} parent=1 // pred_region
      %2111 = vsyncadd [#allocation4], 0
      %s2113 = sshll.u32 [#allocation10], 4
      %s2114 = int_to_ptr.vmem [resolvable:$true] %s2113
      %s2115 = sshll.u32 %s5, 4
      %s2116 = int_to_ptr.hbm [resolvable:$true] %s2115
      %2118 = dma.vmem_to_hbm [thread:$0]  %s2114, 32, %s2116, [#allocation4]
    $region41: #{tpu_custom_call.1} parent=1 // pred_fallthru
      _
    // Predicated region
    $region42: #{tpu_custom_call.1} parent=1 // pred_check
      _
    $region43: #{tpu_custom_call.1} parent=1 // pred_check_branch
      %2120 = sbr.rel (0) target = $region45
    $region44: #{tpu_custom_call.1} parent=1 // pred_region
      %2122 = dma.done [#allocation4], 32
    $region45: #{tpu_custom_call.1} parent=1 // pred_fallthru
      _
    %2123 = vsyncpa [#allocation3], 1
    %2124 = vsyncpa [#allocation6], 1
    %2125 = vsyncpa [#allocation9], 1
    %2126 = vsyncpa [#allocation4], 1

</llo_original>
